<compile_context>
chip_gen: v7x
topology: tpu7x:2x2x1
jax: 0.10.0
libtpu: 0.0.40
codegen_flags: <defaults>
</compile_context>

<pallas_src>
import jax
import jax.numpy as jnp
import numpy as np
from jax import lax
from jax.experimental import pallas as pl
from jax.experimental.pallas import tpu as pltpu


def _make_kernel(T, Bp, H):
    """Kernel with static T (unrolled), padded batch Bp, hidden size H baked in."""

    def kernel(xp_ref, wih_ref, bih_ref, whh_ref,
               woutf_ref, woutb_ref, bout_ref, out_ref):
        # ---- bulk paired input projection for BOTH directions (one matmul) ----
        # (T*Bp, 2F) @ (2F, 8H) + (1, 8H); row block t holds fwd(t) / bwd(T-1-t) gates
        # in the per-gate interleaved layout [i_f,i_b, f_f,f_b, g_f,g_b, o_f,o_b].
        gates_in = (jnp.dot(xp_ref[...], wih_ref[...],
                            preferred_element_type=jnp.float32)
                    + bih_ref[...])

        whh = whh_ref[...]                         # (2H, 8H) block-diag recurrent weights

        h_cat = jnp.zeros((Bp, 2 * H), jnp.float32)   # [hf | hb]
        c_cat = jnp.zeros((Bp, 2 * H), jnp.float32)   # [cf | cb]
        hs_f, hs_b = [], []

        # ---- fused fwd/bwd recurrence: one MXU pass + one sigmoid per step ----
        for t in range(T):
            g = (gates_in[t * Bp:(t + 1) * Bp, :]                 # tile-aligned row block
                 + jnp.dot(h_cat, whh, preferred_element_type=jnp.float32))  # (Bp, 8H)
            sig = jax.nn.sigmoid(g)                               # full-width, one EUP push
            tan_g = jnp.tanh(g[:, 4 * H:6 * H])                   # tanh only on the g block
            c_cat = sig[:, 2 * H:4 * H] * c_cat + sig[:, 0:2 * H] * tan_g
            h_cat = sig[:, 6 * H:8 * H] * jnp.tanh(c_cat)
            hs_f.append(h_cat[:, 0:H])        # fwd hidden for time t
            hs_b.append(h_cat[:, H:2 * H])    # bwd hidden for time T-1-t

        # ---- bulk output Linear as a K-split (no lane concat, no scratch) ----
        hf_all = jnp.concatenate(hs_f, axis=0)          # (T*Bp, H), time order
        hb_all = jnp.concatenate(hs_b[::-1], axis=0)    # (T*Bp, H), time order
        out_ref[...] = (jnp.dot(hf_all, woutf_ref[...], preferred_element_type=jnp.float32)
                        + jnp.dot(hb_all, woutb_ref[...], preferred_element_type=jnp.float32)
                        + bout_ref[...])

    return kernel


def bidirectional_lstm(x, params):
    """x: (T, B, F) float32. Returns (T, B, output_size) float32."""
    T, B, F = x.shape
    H = params["w_hh_f"].shape[1]
    O = params["w_out"].shape[0]
    Bp = max(8, ((B + 7) // 8) * 8)          # pad batch to a sublane multiple

    def gate_interleave(cf, cb):
        # cf, cb: (K, 4H) with PyTorch gate order i,f,g,o along last axis.
        # -> (K, 8H) per-gate interleaved [i_f,i_b, f_f,f_b, g_f,g_b, o_f,o_b].
        parts = []
        for gi in range(4):
            parts.append(cf[:, gi * H:(gi + 1) * H])
            parts.append(cb[:, gi * H:(gi + 1) * H])
        return jnp.concatenate(parts, axis=1)

    zF = jnp.zeros((F, 4 * H), jnp.float32)
    zH = jnp.zeros((H, 4 * H), jnp.float32)
    # Block-diagonal input weights: rows 0:F act on x[t] (fwd), rows F:2F on x[T-1-t] (bwd).
    wih_bd = gate_interleave(jnp.concatenate([params["w_ih_f"].T, zF], axis=0),
                             jnp.concatenate([zF, params["w_ih_b"].T], axis=0))   # (2F, 8H)
    # Block-diagonal recurrent weights: rows 0:H act on hf, rows H:2H on hb.
    whh_bd = gate_interleave(jnp.concatenate([params["w_hh_f"].T, zH], axis=0),
                             jnp.concatenate([zH, params["w_hh_b"].T], axis=0))   # (2H, 8H)
    # Folded biases in the same interleaved layout.
    bih = gate_interleave((params["b_ih_f"] + params["b_hh_f"])[None, :],
                          (params["b_ih_b"] + params["b_hh_b"])[None, :])         # (1, 8H)
    # Output Linear, K-split by direction.
    wout_f = params["w_out"][:, 0:H].T                                            # (H, O)
    wout_b = params["w_out"][:, H:2 * H].T                                        # (H, O)
    bout = params["b_out"][None, :]                                               # (1, O)

    # Time-paired, batch-padded input: x_pair[t] = [x[t], x[T-1-t]] along features.
    x_pair = jnp.concatenate([x, x[::-1]], axis=-1)                               # (T, B, 2F)
    x_pair = jnp.pad(x_pair, ((0, 0), (0, Bp - B), (0, 0)))                       # (T, Bp, 2F)
    x_pair = x_pair.reshape(T * Bp, 2 * F)

    vmem = pl.BlockSpec(memory_space=pltpu.MemorySpace.VMEM)
    out2d = pl.pallas_call(
        _make_kernel(T, Bp, H),
        out_shape=jax.ShapeDtypeStruct((T * Bp, O), jnp.float32),
        in_specs=[vmem] * 7,
        out_specs=vmem,
    )(x_pair, wih_bd, bih, whh_bd, wout_f, wout_b, bout)
    return out2d.reshape(T, Bp, O)[:, :B, :]


# ---------------- pure-JAX reference for validation ----------------
def _lstm_scan(x, w_ih, w_hh, b_ih, b_hh, reverse=False):
    _, B, _ = x.shape
    H = w_hh.shape[1]

    def cell(carry, x_t):
        h, c = carry
        gates = x_t @ w_ih.T + b_ih + h @ w_hh.T + b_hh
        i, f, g, o = jnp.split(gates, 4, axis=-1)
        c = jax.nn.sigmoid(f) * c + jax.nn.sigmoid(i) * jnp.tanh(g)
        h = jax.nn.sigmoid(o) * jnp.tanh(c)
        return (h, c), h

    init = (jnp.zeros((B, H), jnp.float32), jnp.zeros((B, H), jnp.float32))
    xs = x[::-1] if reverse else x
    _, hs = lax.scan(cell, init, xs)
    return hs[::-1] if reverse else hs


def reference(x, params):
    hf = _lstm_scan(x, params["w_ih_f"], params["w_hh_f"],
                    params["b_ih_f"], params["b_hh_f"])
    hb = _lstm_scan(x, params["w_ih_b"], params["w_hh_b"],
                    params["b_ih_b"], params["b_hh_b"], reverse=True)
    rec = jnp.concatenate([hf, hb], axis=-1)        # (T, B, 2H)
    T, B, H2 = rec.shape
    out = rec.reshape(T * B, H2) @ params["w_out"].T + params["b_out"]
    return out.reshape(T, B, -1)


def init_params(key, num_features, hidden_size, output_size):
    k = 1.0 / np.sqrt(hidden_size)
    keys = jax.random.split(key, 10)

    def u(kk, shape):
        return jax.random.uniform(kk, shape, jnp.float32, minval=-k, maxval=k)

    H, F, O = hidden_size, num_features, output_size
    return {
        "w_ih_f": u(keys[0], (4 * H, F)),
        "w_hh_f": u(keys[1], (4 * H, H)),
        "b_ih_f": u(keys[2], (4 * H,)),
        "b_hh_f": u(keys[3], (4 * H,)),
        "w_ih_b": u(keys[4], (4 * H, F)),
        "w_hh_b": u(keys[5], (4 * H, H)),
        "b_ih_b": u(keys[6], (4 * H,)),
        "b_hh_b": u(keys[7], (4 * H,)),
        "w_out": u(keys[8], (O, 2 * H)),
        "b_out": u(keys[9], (O,)),
    }


if __name__ == "__main__":
    T, B, F, H, O = 8, 2, 16, 32, 16

    key = jax.random.PRNGKey(0)
    kx, kp = jax.random.split(key)
    x = jax.random.normal(kx, (T, B, F), jnp.float32)
    params = init_params(kp, F, H, O)

    out = bidirectional_lstm(x, params)
    out = jax.block_until_ready(out)

    ref = jax.block_until_ready(reference(x, params))
    assert out.shape == (T, B, O), out.shape
    np.testing.assert_allclose(np.asarray(out), np.asarray(ref),
                               rtol=2e-2, atol=2e-2)
    print("KERNEL_OK")
</pallas_src>

<mosaic_0001>
module attributes {stable_mosaic.version = 11 : i64} {
  func.func @kernel(%arg0: memref<64x32xf32, #tpu.memory_space<vmem>>, %arg1: memref<32x256xf32, #tpu.memory_space<vmem>>, %arg2: memref<1x256xf32, #tpu.memory_space<vmem>>, %arg3: memref<64x256xf32, #tpu.memory_space<vmem>>, %arg4: memref<32x16xf32, #tpu.memory_space<vmem>>, %arg5: memref<32x16xf32, #tpu.memory_space<vmem>>, %arg6: memref<1x16xf32, #tpu.memory_space<vmem>>, %arg7: memref<64x16xf32, #tpu.memory_space<vmem>>) attributes {dimension_semantics = [], scalar_prefetch = 0 : i64, scratch_operands = 0 : i64, tpu.core_type = #tpu.core_type<tc>} {
    %c0 = arith.constant 0 : index
    %c0_0 = arith.constant 0 : index
    %0 = vector.load %arg0[%c0, %c0_0] : memref<64x32xf32, #tpu.memory_space<vmem>>, vector<64x32xf32>
    %c0_1 = arith.constant 0 : index
    %c0_2 = arith.constant 0 : index
    %1 = vector.load %arg1[%c0_1, %c0_2] : memref<32x256xf32, #tpu.memory_space<vmem>>, vector<32x256xf32>
    %cst = arith.constant dense<0.000000e+00> : vector<64x256xf32>
    %2 = tpu.matmul %0, %1, %cst {dimension_numbers = #tpu.dot_dimension_numbers<[1], [0], [0], [1], [0, 0, 1, 1], [], []>} : vector<64x32xf32>, vector<32x256xf32>, vector<64x256xf32> -> vector<64x256xf32>
    %c0_3 = arith.constant 0 : index
    %c0_4 = arith.constant 0 : index
    %3 = vector.load %arg2[%c0_3, %c0_4] : memref<1x256xf32, #tpu.memory_space<vmem>>, vector<1x256xf32>
    %4 = vector.broadcast %3 : vector<1x256xf32> to vector<64x256xf32>
    %5 = arith.addf %2, %4 : vector<64x256xf32>
    %c0_5 = arith.constant 0 : index
    %c0_6 = arith.constant 0 : index
    %6 = vector.load %arg3[%c0_5, %c0_6] : memref<64x256xf32, #tpu.memory_space<vmem>>, vector<64x256xf32>
    %cst_7 = arith.constant 0.000000e+00 : f32
    %7 = vector.broadcast %cst_7 : f32 to vector<8x64xf32>
    %cst_8 = arith.constant 0.000000e+00 : f32
    %8 = vector.broadcast %cst_8 : f32 to vector<8x64xf32>
    %9 = vector.extract_strided_slice %5 {offsets = [0, 0], sizes = [8, 256], strides = [1, 1]} : vector<64x256xf32> to vector<8x256xf32>
    %cst_9 = arith.constant dense<0.000000e+00> : vector<8x256xf32>
    %10 = tpu.matmul %7, %6, %cst_9 {dimension_numbers = #tpu.dot_dimension_numbers<[1], [0], [0], [1], [0, 0, 1, 1], [], []>} : vector<8x64xf32>, vector<64x256xf32>, vector<8x256xf32> -> vector<8x256xf32>
    %11 = arith.addf %9, %10 : vector<8x256xf32>
    %12 = arith.negf %11 : vector<8x256xf32>
    %13 = math.exp %12 : vector<8x256xf32>
    %cst_10 = arith.constant 1.000000e+00 : f32
    %14 = vector.broadcast %cst_10 : f32 to vector<8x256xf32>
    %15 = arith.addf %14, %13 : vector<8x256xf32>
    %16 = arith.divf %14, %15 : vector<8x256xf32>
    %17 = vector.extract_strided_slice %11 {offsets = [0, 128], sizes = [8, 64], strides = [1, 1]} : vector<8x256xf32> to vector<8x64xf32>
    %18 = math.tanh %17 : vector<8x64xf32>
    %19 = vector.extract_strided_slice %16 {offsets = [0, 64], sizes = [8, 64], strides = [1, 1]} : vector<8x256xf32> to vector<8x64xf32>
    %20 = arith.mulf %19, %8 : vector<8x64xf32>
    %21 = vector.extract_strided_slice %16 {offsets = [0, 0], sizes = [8, 64], strides = [1, 1]} : vector<8x256xf32> to vector<8x64xf32>
    %22 = arith.mulf %21, %18 : vector<8x64xf32>
    %23 = arith.addf %20, %22 : vector<8x64xf32>
    %24 = vector.extract_strided_slice %16 {offsets = [0, 192], sizes = [8, 64], strides = [1, 1]} : vector<8x256xf32> to vector<8x64xf32>
    %25 = math.tanh %23 : vector<8x64xf32>
    %26 = arith.mulf %24, %25 : vector<8x64xf32>
    %27 = vector.extract_strided_slice %26 {offsets = [0, 0], sizes = [8, 32], strides = [1, 1]} : vector<8x64xf32> to vector<8x32xf32>
    %28 = vector.extract_strided_slice %26 {offsets = [0, 32], sizes = [8, 32], strides = [1, 1]} : vector<8x64xf32> to vector<8x32xf32>
    %29 = vector.extract_strided_slice %5 {offsets = [8, 0], sizes = [8, 256], strides = [1, 1]} : vector<64x256xf32> to vector<8x256xf32>
    %cst_11 = arith.constant dense<0.000000e+00> : vector<8x256xf32>
    %30 = tpu.matmul %26, %6, %cst_11 {dimension_numbers = #tpu.dot_dimension_numbers<[1], [0], [0], [1], [0, 0, 1, 1], [], []>} : vector<8x64xf32>, vector<64x256xf32>, vector<8x256xf32> -> vector<8x256xf32>
    %31 = arith.addf %29, %30 : vector<8x256xf32>
    %32 = arith.negf %31 : vector<8x256xf32>
    %33 = math.exp %32 : vector<8x256xf32>
    %cst_12 = arith.constant 1.000000e+00 : f32
    %34 = vector.broadcast %cst_12 : f32 to vector<8x256xf32>
    %35 = arith.addf %34, %33 : vector<8x256xf32>
    %36 = arith.divf %34, %35 : vector<8x256xf32>
    %37 = vector.extract_strided_slice %31 {offsets = [0, 128], sizes = [8, 64], strides = [1, 1]} : vector<8x256xf32> to vector<8x64xf32>
    %38 = math.tanh %37 : vector<8x64xf32>
    %39 = vector.extract_strided_slice %36 {offsets = [0, 64], sizes = [8, 64], strides = [1, 1]} : vector<8x256xf32> to vector<8x64xf32>
    %40 = arith.mulf %39, %23 : vector<8x64xf32>
    %41 = vector.extract_strided_slice %36 {offsets = [0, 0], sizes = [8, 64], strides = [1, 1]} : vector<8x256xf32> to vector<8x64xf32>
    %42 = arith.mulf %41, %38 : vector<8x64xf32>
    %43 = arith.addf %40, %42 : vector<8x64xf32>
    %44 = vector.extract_strided_slice %36 {offsets = [0, 192], sizes = [8, 64], strides = [1, 1]} : vector<8x256xf32> to vector<8x64xf32>
    %45 = math.tanh %43 : vector<8x64xf32>
    %46 = arith.mulf %44, %45 : vector<8x64xf32>
    %47 = vector.extract_strided_slice %46 {offsets = [0, 0], sizes = [8, 32], strides = [1, 1]} : vector<8x64xf32> to vector<8x32xf32>
    %48 = vector.extract_strided_slice %46 {offsets = [0, 32], sizes = [8, 32], strides = [1, 1]} : vector<8x64xf32> to vector<8x32xf32>
    %49 = vector.extract_strided_slice %5 {offsets = [16, 0], sizes = [8, 256], strides = [1, 1]} : vector<64x256xf32> to vector<8x256xf32>
    %cst_13 = arith.constant dense<0.000000e+00> : vector<8x256xf32>
    %50 = tpu.matmul %46, %6, %cst_13 {dimension_numbers = #tpu.dot_dimension_numbers<[1], [0], [0], [1], [0, 0, 1, 1], [], []>} : vector<8x64xf32>, vector<64x256xf32>, vector<8x256xf32> -> vector<8x256xf32>
    %51 = arith.addf %49, %50 : vector<8x256xf32>
    %52 = arith.negf %51 : vector<8x256xf32>
    %53 = math.exp %52 : vector<8x256xf32>
    %cst_14 = arith.constant 1.000000e+00 : f32
    %54 = vector.broadcast %cst_14 : f32 to vector<8x256xf32>
    %55 = arith.addf %54, %53 : vector<8x256xf32>
    %56 = arith.divf %54, %55 : vector<8x256xf32>
    %57 = vector.extract_strided_slice %51 {offsets = [0, 128], sizes = [8, 64], strides = [1, 1]} : vector<8x256xf32> to vector<8x64xf32>
    %58 = math.tanh %57 : vector<8x64xf32>
    %59 = vector.extract_strided_slice %56 {offsets = [0, 64], sizes = [8, 64], strides = [1, 1]} : vector<8x256xf32> to vector<8x64xf32>
    %60 = arith.mulf %59, %43 : vector<8x64xf32>
    %61 = vector.extract_strided_slice %56 {offsets = [0, 0], sizes = [8, 64], strides = [1, 1]} : vector<8x256xf32> to vector<8x64xf32>
    %62 = arith.mulf %61, %58 : vector<8x64xf32>
    %63 = arith.addf %60, %62 : vector<8x64xf32>
    %64 = vector.extract_strided_slice %56 {offsets = [0, 192], sizes = [8, 64], strides = [1, 1]} : vector<8x256xf32> to vector<8x64xf32>
    %65 = math.tanh %63 : vector<8x64xf32>
    %66 = arith.mulf %64, %65 : vector<8x64xf32>
    %67 = vector.extract_strided_slice %66 {offsets = [0, 0], sizes = [8, 32], strides = [1, 1]} : vector<8x64xf32> to vector<8x32xf32>
    %68 = vector.extract_strided_slice %66 {offsets = [0, 32], sizes = [8, 32], strides = [1, 1]} : vector<8x64xf32> to vector<8x32xf32>
    %69 = vector.extract_strided_slice %5 {offsets = [24, 0], sizes = [8, 256], strides = [1, 1]} : vector<64x256xf32> to vector<8x256xf32>
    %cst_15 = arith.constant dense<0.000000e+00> : vector<8x256xf32>
    %70 = tpu.matmul %66, %6, %cst_15 {dimension_numbers = #tpu.dot_dimension_numbers<[1], [0], [0], [1], [0, 0, 1, 1], [], []>} : vector<8x64xf32>, vector<64x256xf32>, vector<8x256xf32> -> vector<8x256xf32>
    %71 = arith.addf %69, %70 : vector<8x256xf32>
    %72 = arith.negf %71 : vector<8x256xf32>
    %73 = math.exp %72 : vector<8x256xf32>
    %cst_16 = arith.constant 1.000000e+00 : f32
    %74 = vector.broadcast %cst_16 : f32 to vector<8x256xf32>
    %75 = arith.addf %74, %73 : vector<8x256xf32>
    %76 = arith.divf %74, %75 : vector<8x256xf32>
    %77 = vector.extract_strided_slice %71 {offsets = [0, 128], sizes = [8, 64], strides = [1, 1]} : vector<8x256xf32> to vector<8x64xf32>
    %78 = math.tanh %77 : vector<8x64xf32>
    %79 = vector.extract_strided_slice %76 {offsets = [0, 64], sizes = [8, 64], strides = [1, 1]} : vector<8x256xf32> to vector<8x64xf32>
    %80 = arith.mulf %79, %63 : vector<8x64xf32>
    %81 = vector.extract_strided_slice %76 {offsets = [0, 0], sizes = [8, 64], strides = [1, 1]} : vector<8x256xf32> to vector<8x64xf32>
    %82 = arith.mulf %81, %78 : vector<8x64xf32>
    %83 = arith.addf %80, %82 : vector<8x64xf32>
    %84 = vector.extract_strided_slice %76 {offsets = [0, 192], sizes = [8, 64], strides = [1, 1]} : vector<8x256xf32> to vector<8x64xf32>
    %85 = math.tanh %83 : vector<8x64xf32>
    %86 = arith.mulf %84, %85 : vector<8x64xf32>
    %87 = vector.extract_strided_slice %86 {offsets = [0, 0], sizes = [8, 32], strides = [1, 1]} : vector<8x64xf32> to vector<8x32xf32>
    %88 = vector.extract_strided_slice %86 {offsets = [0, 32], sizes = [8, 32], strides = [1, 1]} : vector<8x64xf32> to vector<8x32xf32>
    %89 = vector.extract_strided_slice %5 {offsets = [32, 0], sizes = [8, 256], strides = [1, 1]} : vector<64x256xf32> to vector<8x256xf32>
    %cst_17 = arith.constant dense<0.000000e+00> : vector<8x256xf32>
    %90 = tpu.matmul %86, %6, %cst_17 {dimension_numbers = #tpu.dot_dimension_numbers<[1], [0], [0], [1], [0, 0, 1, 1], [], []>} : vector<8x64xf32>, vector<64x256xf32>, vector<8x256xf32> -> vector<8x256xf32>
    %91 = arith.addf %89, %90 : vector<8x256xf32>
    %92 = arith.negf %91 : vector<8x256xf32>
    %93 = math.exp %92 : vector<8x256xf32>
    %cst_18 = arith.constant 1.000000e+00 : f32
    %94 = vector.broadcast %cst_18 : f32 to vector<8x256xf32>
    %95 = arith.addf %94, %93 : vector<8x256xf32>
    %96 = arith.divf %94, %95 : vector<8x256xf32>
    %97 = vector.extract_strided_slice %91 {offsets = [0, 128], sizes = [8, 64], strides = [1, 1]} : vector<8x256xf32> to vector<8x64xf32>
    %98 = math.tanh %97 : vector<8x64xf32>
    %99 = vector.extract_strided_slice %96 {offsets = [0, 64], sizes = [8, 64], strides = [1, 1]} : vector<8x256xf32> to vector<8x64xf32>
    %100 = arith.mulf %99, %83 : vector<8x64xf32>
    %101 = vector.extract_strided_slice %96 {offsets = [0, 0], sizes = [8, 64], strides = [1, 1]} : vector<8x256xf32> to vector<8x64xf32>
    %102 = arith.mulf %101, %98 : vector<8x64xf32>
    %103 = arith.addf %100, %102 : vector<8x64xf32>
    %104 = vector.extract_strided_slice %96 {offsets = [0, 192], sizes = [8, 64], strides = [1, 1]} : vector<8x256xf32> to vector<8x64xf32>
    %105 = math.tanh %103 : vector<8x64xf32>
    %106 = arith.mulf %104, %105 : vector<8x64xf32>
    %107 = vector.extract_strided_slice %106 {offsets = [0, 0], sizes = [8, 32], strides = [1, 1]} : vector<8x64xf32> to vector<8x32xf32>
    %108 = vector.extract_strided_slice %106 {offsets = [0, 32], sizes = [8, 32], strides = [1, 1]} : vector<8x64xf32> to vector<8x32xf32>
    %109 = vector.extract_strided_slice %5 {offsets = [40, 0], sizes = [8, 256], strides = [1, 1]} : vector<64x256xf32> to vector<8x256xf32>
    %cst_19 = arith.constant dense<0.000000e+00> : vector<8x256xf32>
    %110 = tpu.matmul %106, %6, %cst_19 {dimension_numbers = #tpu.dot_dimension_numbers<[1], [0], [0], [1], [0, 0, 1, 1], [], []>} : vector<8x64xf32>, vector<64x256xf32>, vector<8x256xf32> -> vector<8x256xf32>
    %111 = arith.addf %109, %110 : vector<8x256xf32>
    %112 = arith.negf %111 : vector<8x256xf32>
    %113 = math.exp %112 : vector<8x256xf32>
    %cst_20 = arith.constant 1.000000e+00 : f32
    %114 = vector.broadcast %cst_20 : f32 to vector<8x256xf32>
    %115 = arith.addf %114, %113 : vector<8x256xf32>
    %116 = arith.divf %114, %115 : vector<8x256xf32>
    %117 = vector.extract_strided_slice %111 {offsets = [0, 128], sizes = [8, 64], strides = [1, 1]} : vector<8x256xf32> to vector<8x64xf32>
    %118 = math.tanh %117 : vector<8x64xf32>
    %119 = vector.extract_strided_slice %116 {offsets = [0, 64], sizes = [8, 64], strides = [1, 1]} : vector<8x256xf32> to vector<8x64xf32>
    %120 = arith.mulf %119, %103 : vector<8x64xf32>
    %121 = vector.extract_strided_slice %116 {offsets = [0, 0], sizes = [8, 64], strides = [1, 1]} : vector<8x256xf32> to vector<8x64xf32>
    %122 = arith.mulf %121, %118 : vector<8x64xf32>
    %123 = arith.addf %120, %122 : vector<8x64xf32>
    %124 = vector.extract_strided_slice %116 {offsets = [0, 192], sizes = [8, 64], strides = [1, 1]} : vector<8x256xf32> to vector<8x64xf32>
    %125 = math.tanh %123 : vector<8x64xf32>
    %126 = arith.mulf %124, %125 : vector<8x64xf32>
    %127 = vector.extract_strided_slice %126 {offsets = [0, 0], sizes = [8, 32], strides = [1, 1]} : vector<8x64xf32> to vector<8x32xf32>
    %128 = vector.extract_strided_slice %126 {offsets = [0, 32], sizes = [8, 32], strides = [1, 1]} : vector<8x64xf32> to vector<8x32xf32>
    %129 = vector.extract_strided_slice %5 {offsets = [48, 0], sizes = [8, 256], strides = [1, 1]} : vector<64x256xf32> to vector<8x256xf32>
    %cst_21 = arith.constant dense<0.000000e+00> : vector<8x256xf32>
    %130 = tpu.matmul %126, %6, %cst_21 {dimension_numbers = #tpu.dot_dimension_numbers<[1], [0], [0], [1], [0, 0, 1, 1], [], []>} : vector<8x64xf32>, vector<64x256xf32>, vector<8x256xf32> -> vector<8x256xf32>
    %131 = arith.addf %129, %130 : vector<8x256xf32>
    %132 = arith.negf %131 : vector<8x256xf32>
    %133 = math.exp %132 : vector<8x256xf32>
    %cst_22 = arith.constant 1.000000e+00 : f32
    %134 = vector.broadcast %cst_22 : f32 to vector<8x256xf32>
    %135 = arith.addf %134, %133 : vector<8x256xf32>
    %136 = arith.divf %134, %135 : vector<8x256xf32>
    %137 = vector.extract_strided_slice %131 {offsets = [0, 128], sizes = [8, 64], strides = [1, 1]} : vector<8x256xf32> to vector<8x64xf32>
    %138 = math.tanh %137 : vector<8x64xf32>
    %139 = vector.extract_strided_slice %136 {offsets = [0, 64], sizes = [8, 64], strides = [1, 1]} : vector<8x256xf32> to vector<8x64xf32>
    %140 = arith.mulf %139, %123 : vector<8x64xf32>
    %141 = vector.extract_strided_slice %136 {offsets = [0, 0], sizes = [8, 64], strides = [1, 1]} : vector<8x256xf32> to vector<8x64xf32>
    %142 = arith.mulf %141, %138 : vector<8x64xf32>
    %143 = arith.addf %140, %142 : vector<8x64xf32>
    %144 = vector.extract_strided_slice %136 {offsets = [0, 192], sizes = [8, 64], strides = [1, 1]} : vector<8x256xf32> to vector<8x64xf32>
    %145 = math.tanh %143 : vector<8x64xf32>
    %146 = arith.mulf %144, %145 : vector<8x64xf32>
    %147 = vector.extract_strided_slice %146 {offsets = [0, 0], sizes = [8, 32], strides = [1, 1]} : vector<8x64xf32> to vector<8x32xf32>
    %148 = vector.extract_strided_slice %146 {offsets = [0, 32], sizes = [8, 32], strides = [1, 1]} : vector<8x64xf32> to vector<8x32xf32>
    %149 = vector.extract_strided_slice %5 {offsets = [56, 0], sizes = [8, 256], strides = [1, 1]} : vector<64x256xf32> to vector<8x256xf32>
    %cst_23 = arith.constant dense<0.000000e+00> : vector<8x256xf32>
    %150 = tpu.matmul %146, %6, %cst_23 {dimension_numbers = #tpu.dot_dimension_numbers<[1], [0], [0], [1], [0, 0, 1, 1], [], []>} : vector<8x64xf32>, vector<64x256xf32>, vector<8x256xf32> -> vector<8x256xf32>
    %151 = arith.addf %149, %150 : vector<8x256xf32>
    %152 = arith.negf %151 : vector<8x256xf32>
    %153 = math.exp %152 : vector<8x256xf32>
    %cst_24 = arith.constant 1.000000e+00 : f32
    %154 = vector.broadcast %cst_24 : f32 to vector<8x256xf32>
    %155 = arith.addf %154, %153 : vector<8x256xf32>
    %156 = arith.divf %154, %155 : vector<8x256xf32>
    %157 = vector.extract_strided_slice %151 {offsets = [0, 128], sizes = [8, 64], strides = [1, 1]} : vector<8x256xf32> to vector<8x64xf32>
    %158 = math.tanh %157 : vector<8x64xf32>
    %159 = vector.extract_strided_slice %156 {offsets = [0, 64], sizes = [8, 64], strides = [1, 1]} : vector<8x256xf32> to vector<8x64xf32>
    %160 = arith.mulf %159, %143 : vector<8x64xf32>
    %161 = vector.extract_strided_slice %156 {offsets = [0, 0], sizes = [8, 64], strides = [1, 1]} : vector<8x256xf32> to vector<8x64xf32>
    %162 = arith.mulf %161, %158 : vector<8x64xf32>
    %163 = arith.addf %160, %162 : vector<8x64xf32>
    %164 = vector.extract_strided_slice %156 {offsets = [0, 192], sizes = [8, 64], strides = [1, 1]} : vector<8x256xf32> to vector<8x64xf32>
    %165 = math.tanh %163 : vector<8x64xf32>
    %166 = arith.mulf %164, %165 : vector<8x64xf32>
    %167 = vector.extract_strided_slice %166 {offsets = [0, 0], sizes = [8, 32], strides = [1, 1]} : vector<8x64xf32> to vector<8x32xf32>
    %168 = vector.extract_strided_slice %166 {offsets = [0, 32], sizes = [8, 32], strides = [1, 1]} : vector<8x64xf32> to vector<8x32xf32>
    %169 = tpu.concatenate %27, %47, %67, %87, %107, %127, %147, %167 in 0 : vector<8x32xf32>, vector<8x32xf32>, vector<8x32xf32>, vector<8x32xf32>, vector<8x32xf32>, vector<8x32xf32>, vector<8x32xf32>, vector<8x32xf32> -> vector<64x32xf32>
    %170 = tpu.concatenate %168, %148, %128, %108, %88, %68, %48, %28 in 0 : vector<8x32xf32>, vector<8x32xf32>, vector<8x32xf32>, vector<8x32xf32>, vector<8x32xf32>, vector<8x32xf32>, vector<8x32xf32>, vector<8x32xf32> -> vector<64x32xf32>
    %c0_25 = arith.constant 0 : index
    %c0_26 = arith.constant 0 : index
    %171 = vector.load %arg4[%c0_25, %c0_26] : memref<32x16xf32, #tpu.memory_space<vmem>>, vector<32x16xf32>
    %cst_27 = arith.constant dense<0.000000e+00> : vector<64x16xf32>
    %172 = tpu.matmul %169, %171, %cst_27 {dimension_numbers = #tpu.dot_dimension_numbers<[1], [0], [0], [1], [0, 0, 1, 1], [], []>} : vector<64x32xf32>, vector<32x16xf32>, vector<64x16xf32> -> vector<64x16xf32>
    %c0_28 = arith.constant 0 : index
    %c0_29 = arith.constant 0 : index
    %173 = vector.load %arg5[%c0_28, %c0_29] : memref<32x16xf32, #tpu.memory_space<vmem>>, vector<32x16xf32>
    %cst_30 = arith.constant dense<0.000000e+00> : vector<64x16xf32>
    %174 = tpu.matmul %170, %173, %cst_30 {dimension_numbers = #tpu.dot_dimension_numbers<[1], [0], [0], [1], [0, 0, 1, 1], [], []>} : vector<64x32xf32>, vector<32x16xf32>, vector<64x16xf32> -> vector<64x16xf32>
    %175 = arith.addf %172, %174 : vector<64x16xf32>
    %c0_31 = arith.constant 0 : index
    %c0_32 = arith.constant 0 : index
    %176 = vector.load %arg6[%c0_31, %c0_32] : memref<1x16xf32, #tpu.memory_space<vmem>>, vector<1x16xf32>
    %177 = vector.broadcast %176 : vector<1x16xf32> to vector<64x16xf32>
    %178 = arith.addf %175, %177 : vector<64x16xf32>
    %c0_33 = arith.constant 0 : index
    %c0_34 = arith.constant 0 : index
    %179 = vector.load %arg7[%c0_33, %c0_34] : memref<64x16xf32, #tpu.memory_space<vmem>>, vector<64x16xf32>
    tpu.vector_store %arg7[%c0_33, %c0_34], %178 {strides = array<i32>} : memref<64x16xf32, #tpu.memory_space<vmem>>, vector<64x16xf32>,
    return
  }
}

</mosaic_0001>

<llo_original>
// kernel: tpu_custom_call.1
$region0: #{tpu_custom_call.1}
  #allocation0 [shape = 'u32[]', space=smem, size = 0x4, offset = 0x4, fixed_abs, tag = 'smem constant byte address 0x4 - core index']
  #allocation1 [shape = 'u32[144,128]{1,0:T(1,128)}', space=vmem, size = 0x12000, scoped, tag = 'internal scratch']
  %s0 = inlined_call_operand.vmem [shape: f32[64,32], index: 0, kind: input, shape index: {}]
  %s1 = inlined_call_operand.vmem [shape: f32[32,256], index: 1, kind: input, shape index: {}]
  %s2 = inlined_call_operand.vmem [shape: f32[1,256], index: 2, kind: input, shape index: {}]
  %s3 = inlined_call_operand.vmem [shape: f32[64,256], index: 3, kind: input, shape index: {}]
  %s4 = inlined_call_operand.vmem [shape: f32[32,16], index: 4, kind: input, shape index: {}]
  %s5 = inlined_call_operand.vmem [shape: f32[32,16], index: 5, kind: input, shape index: {}]
  %s6 = inlined_call_operand.vmem [shape: f32[1,16], index: 6, kind: input, shape index: {}]
  %s7 = inlined_call_operand.vmem [shape: f32[64,16], index: 7, kind: output, shape index: {}]
  %s8 = sld [smem:[#allocation0]]
  $region38: #{tpu_custom_call.1} parent=0
    _
  %s10 = ssub.s32 1, %s8
  %s11 = scalar_select 0, %s10, %s8
  // Predicated region
  $region2: #{tpu_custom_call.1} parent=0 // pred_check
    _
  $region3: #{tpu_custom_call.1} parent=0 // pred_check_branch
    %13 = sbr.rel (0) target = $region5
  $region4: #{tpu_custom_call.1} parent=0 // pred_region
    _
  $region5: #{tpu_custom_call.1} parent=0 // pred_fallthru
    _
  // Predicated region
  $region6: #{tpu_custom_call.1} parent=0 // pred_check
    _
  $region7: #{tpu_custom_call.1} parent=0 // pred_check_branch
    %15 = sbr.rel (0) target = $region9
  $region8: #{tpu_custom_call.1} parent=0 // pred_region
    _
  $region9: #{tpu_custom_call.1} parent=0 // pred_fallthru
    _
  // Predicated region
  $region10: #{tpu_custom_call.1} parent=0 // pred_check
    _
  $region11: #{tpu_custom_call.1} parent=0 // pred_check_branch
    %17 = sbr.rel (0) target = $region13
  $region12: #{tpu_custom_call.1} parent=0 // pred_region
    _
  $region13: #{tpu_custom_call.1} parent=0 // pred_fallthru
    _
  // Predicated region
  $region14: #{tpu_custom_call.1} parent=0 // pred_check
    _
  $region15: #{tpu_custom_call.1} parent=0 // pred_check_branch
    %19 = sbr.rel (0) target = $region17
  $region16: #{tpu_custom_call.1} parent=0 // pred_region
    _
  $region17: #{tpu_custom_call.1} parent=0 // pred_fallthru
    _
  // Predicated region
  $region18: #{tpu_custom_call.1} parent=0 // pred_check
    _
  $region19: #{tpu_custom_call.1} parent=0 // pred_check_branch
    %21 = sbr.rel (0) target = $region21
  $region20: #{tpu_custom_call.1} parent=0 // pred_region
    _
  $region21: #{tpu_custom_call.1} parent=0 // pred_fallthru
    _
  // Predicated region
  $region22: #{tpu_custom_call.1} parent=0 // pred_check
    _
  $region23: #{tpu_custom_call.1} parent=0 // pred_check_branch
    %23 = sbr.rel (0) target = $region25
  $region24: #{tpu_custom_call.1} parent=0 // pred_region
    _
  $region25: #{tpu_custom_call.1} parent=0 // pred_fallthru
    _
  // Predicated region
  $region26: #{tpu_custom_call.1} parent=0 // pred_check
    _
  $region27: #{tpu_custom_call.1} parent=0 // pred_check_branch
    %25 = sbr.rel (0) target = $region29
  $region28: #{tpu_custom_call.1} parent=0 // pred_region
    _
  $region29: #{tpu_custom_call.1} parent=0 // pred_fallthru
    _
  %v26 = vld [vmem:[%s0] sm:$0xff]
  %v27 = vld [vmem:[%s0 + $0x8] sm:$0xff]
  %v28 = vld [vmem:[%s0 + $0x10] sm:$0xff]
  %v29 = vld [vmem:[%s0 + $0x18] sm:$0xff]
  %v30 = vld [vmem:[%s0 + $0x20] sm:$0xff]
  %v31 = vld [vmem:[%s0 + $0x28] sm:$0xff]
  %v32 = vld [vmem:[%s0 + $0x30] sm:$0xff]
  %v33 = vld [vmem:[%s0 + $0x38] sm:$0xff]
  %v34 = vld [vmem:[%s1] sm:$0xff]
  %v35 = vld [vmem:[%s1 + $0x8] sm:$0xff]
  %v36 = vld [vmem:[%s1 + $0x10] sm:$0xff]
  %v37 = vld [vmem:[%s1 + $0x18] sm:$0xff]
  %v38 = vld [vmem:[%s1 + $0x20] sm:$0xff]
  %v39 = vld [vmem:[%s1 + $0x28] sm:$0xff]
  %v40 = vld [vmem:[%s1 + $0x30] sm:$0xff]
  %v41 = vld [vmem:[%s1 + $0x38] sm:$0xff]
  %v42 = vld [vmem:[%s2] sm:$0x3]
  %v44 = vlaneseq
  %v45 = vshrl.u32 %v44, 7
  %v46 = vsub.s32 0, %v45
  %v47 = vrot.slane %v42, %v46
  %v48 = vlaneseq
  %v49 = vshrl.u32 %v48, 7
  %v50 = vsub.s32 1, %v49
  %v51 = vrot.slane %v42, %v50
  %vm54 = vcmask 261120
  %v56 = vsel %vm54, %v26, 0
  %v59 = vsel %vm54, %v27, 0
  %v62 = vsel %vm54, %v28, 0
  %v65 = vsel %vm54, %v29, 0
  %v68 = vsel %vm54, %v30, 0
  %v71 = vsel %vm54, %v31, 0
  %v74 = vsel %vm54, %v32, 0
  %v77 = vsel %vm54, %v33, 0
  %79 = vmatprep.subr.mxu0 %v35
  %80 = vmatpush1.msra.mxu0 %v34
  %81 = vmatprep.subr.mxu0 %v37
  %82 = vmatpush1.msra.mxu0 %v36
  %83 = vmatprep.subr.mxu0 %v39
  %84 = vmatpush1.msra.mxu0 %v38
  %85 = vmatprep.subr.mxu0 %v41
  %86 = vmatpush1.msra.mxu0 %v40
  %87 = vmatprep.subr.mxu0 0.0
  %88 = vmatpush1.msra.mxu0 0.0
  %89 = vmatprep.subr.mxu0 0.0
  %90 = vmatpush1.msra.mxu0 0.0
  %91 = vmatprep.subr.mxu0 0.0
  %92 = vmatpush1.msra.mxu0 0.0
  %93 = vmatprep.subr.mxu0 0.0
  %94 = vmatpush1.msra.mxu0 0.0
  %95 = vmatprep.subr.mxu0 0.0
  %96 = vmatpush1.msra.mxu0 0.0
  %97 = vmatprep.subr.mxu0 0.0
  %98 = vmatpush1.msra.mxu0 0.0
  %99 = vmatprep.subr.mxu0 0.0
  %100 = vmatpush1.msra.mxu0 0.0
  %101 = vmatprep.subr.mxu0 0.0
  %102 = vmatpush1.msra.mxu0 0.0
  %103 = vmatprep.subr.mxu0 0.0
  %104 = vmatpush1.msra.mxu0 0.0
  %105 = vmatprep.subr.mxu0 0.0
  %106 = vmatpush1.msra.mxu0 0.0
  %107 = vmatprep.subr.mxu0 0.0
  %108 = vmatpush1.msra.mxu0 0.0
  %109 = vmatprep.subr.mxu0 0.0
  %110 = vmatpush1.msra.mxu0 0.0
  %111 = vmatprep.subr.mxu0 0.0
  %112 = vmatpush1.msra.mxu0 0.0
  %113 = vmatprep.subr.mxu0 0.0
  %114 = vmatpush1.msra.mxu0 0.0
  %115 = vmatprep.subr.mxu0 0.0
  %116 = vmatpush1.msra.mxu0 0.0
  %117 = vmatprep.subr.mxu0 0.0
  %118 = vmatpush1.msra.mxu0 0.0
  %119 = vmatprep.subr.mxu0 0.0
  %120 = vmatpush1.msra.mxu0 0.0
  %121 = vmatprep.subr.mxu0 0.0
  %122 = vmatpush1.msra.mxu0 0.0
  %123 = vmatprep.subr.mxu0 0.0
  %124 = vmatpush1.msra.mxu0 0.0
  %125 = vmatprep.subr.mxu0 0.0
  %126 = vmatpush1.msra.mxu0 0.0
  %127 = vmatprep.subr.mxu0 0.0
  %128 = vmatpush1.msra.mxu0 0.0
  %129 = vmatprep.subr.mxu0 0.0
  %130 = vmatpush1.msra.mxu0 0.0
  %131 = vmatprep.subr.mxu0 0.0
  %132 = vmatpush1.msra.mxu0 0.0
  %133 = vmatprep.subr.mxu0 0.0
  %134 = vmatpush1.msra.mxu0 0.0
  %135 = vmatprep.subr.mxu0 0.0
  %136 = vmatpush1.msra.mxu0 0.0
  %137 = vmatprep.subr.mxu0 0.0
  %138 = vmatpush1.msra.mxu0 0.0
  %139 = vmatprep.subr.mxu0 0.0
  %140 = vmatpush1.msra.mxu0 0.0
  %141 = vmatprep.subr.mxu0 0.0
  %142 = vmatpush1.msra.mxu0 0.0
  %143 = vmatprep.mubr.f32.mxu0 0.0
  %144 = vmatmul.mubr.f32.gmra.mrb[0].mxu0 %v56
  %v145 = vpop.f32.mrb[0].mxu0
  %v146 = vadd.f32 %v47, %v145
  %v147 = vpop.f32.mrb[0].mxu0
  %v148 = vadd.f32 %v51, %v147
  %149 = vmatprep.mubr.f32.mxu0 0.0
  %150 = vmatmul.mubr.f32.gmra.mrb[0].mxu0 %v59
  %v151 = vpop.f32.mrb[0].mxu0
  %v152 = vadd.f32 %v47, %v151
  %v153 = vpop.f32.mrb[0].mxu0
  %v154 = vadd.f32 %v51, %v153
  %155 = vmatprep.mubr.f32.mxu0 0.0
  %156 = vmatmul.mubr.f32.gmra.mrb[0].mxu0 %v62
  %v157 = vpop.f32.mrb[0].mxu0
  %v158 = vadd.f32 %v47, %v157
  %v159 = vpop.f32.mrb[0].mxu0
  %v160 = vadd.f32 %v51, %v159
  %161 = vmatprep.mubr.f32.mxu0 0.0
  %162 = vmatmul.mubr.f32.gmra.mrb[0].mxu0 %v65
  %v163 = vpop.f32.mrb[0].mxu0
  %v164 = vadd.f32 %v47, %v163
  %v165 = vpop.f32.mrb[0].mxu0
  %v166 = vadd.f32 %v51, %v165
  %167 = vmatprep.mubr.f32.mxu0 0.0
  %168 = vmatmul.mubr.f32.gmra.mrb[0].mxu0 %v68
  %v169 = vpop.f32.mrb[0].mxu0
  %v170 = vadd.f32 %v47, %v169
  %v171 = vpop.f32.mrb[0].mxu0
  %v172 = vadd.f32 %v51, %v171
  %173 = vmatprep.mubr.f32.mxu0 0.0
  %174 = vmatmul.mubr.f32.gmra.mrb[0].mxu0 %v71
  %v175 = vpop.f32.mrb[0].mxu0
  %v176 = vadd.f32 %v47, %v175
  %v177 = vpop.f32.mrb[0].mxu0
  %v178 = vadd.f32 %v51, %v177
  %179 = vmatprep.mubr.f32.mxu0 0.0
  %180 = vmatmul.mubr.f32.gmra.mrb[0].mxu0 %v74
  %v181 = vpop.f32.mrb[0].mxu0
  %v182 = vadd.f32 %v47, %v181
  %v183 = vpop.f32.mrb[0].mxu0
  %v184 = vadd.f32 %v51, %v183
  %185 = vmatprep.mubr.f32.mxu0 0.0
  %186 = vmatmul.mubr.f32.gmra.mrb[0].mxu0 %v77
  %v187 = vpop.f32.mrb[0].mxu0
  %v188 = vadd.f32 %v47, %v187
  %v189 = vpop.f32.mrb[0].mxu0
  %v190 = vadd.f32 %v51, %v189
  %191 = vdwg.mxu0
  %v192 = vld [vmem:[%s3] sm:$0xff]
  %v193 = vld [vmem:[%s3 + $0x8] sm:$0xff]
  %v194 = vld [vmem:[%s3 + $0x10] sm:$0xff]
  %v195 = vld [vmem:[%s3 + $0x18] sm:$0xff]
  %v196 = vld [vmem:[%s3 + $0x20] sm:$0xff]
  %v197 = vld [vmem:[%s3 + $0x28] sm:$0xff]
  %v198 = vld [vmem:[%s3 + $0x30] sm:$0xff]
  %v199 = vld [vmem:[%s3 + $0x38] sm:$0xff]
  %v200 = vld [vmem:[%s3 + $0x40] sm:$0xff]
  %v201 = vld [vmem:[%s3 + $0x48] sm:$0xff]
  %v202 = vld [vmem:[%s3 + $0x50] sm:$0xff]
  %v203 = vld [vmem:[%s3 + $0x58] sm:$0xff]
  %v204 = vld [vmem:[%s3 + $0x60] sm:$0xff]
  %v205 = vld [vmem:[%s3 + $0x68] sm:$0xff]
  %v206 = vld [vmem:[%s3 + $0x70] sm:$0xff]
  %v207 = vld [vmem:[%s3 + $0x78] sm:$0xff]
  %vm208 = vcmask 523264
  %v210 = vsel %vm208, 0.0, 0
  %212 = vmatprep.subr.mxu0 %v193
  %213 = vmatpush1.msra.mxu0 %v192
  %214 = vmatprep.subr.mxu0 %v195
  %215 = vmatpush1.msra.mxu0 %v194
  %216 = vmatprep.subr.mxu0 %v197
  %217 = vmatpush1.msra.mxu0 %v196
  %218 = vmatprep.subr.mxu0 %v199
  %219 = vmatpush1.msra.mxu0 %v198
  %220 = vmatprep.subr.mxu0 %v201
  %221 = vmatpush1.msra.mxu0 %v200
  %222 = vmatprep.subr.mxu0 %v203
  %223 = vmatpush1.msra.mxu0 %v202
  %224 = vmatprep.subr.mxu0 %v205
  %225 = vmatpush1.msra.mxu0 %v204
  %226 = vmatprep.subr.mxu0 %v207
  %227 = vmatpush1.msra.mxu0 %v206
  %228 = vmatprep.subr.mxu0 0.0
  %229 = vmatpush1.msra.mxu0 0.0
  %230 = vmatprep.subr.mxu0 0.0
  %231 = vmatpush1.msra.mxu0 0.0
  %232 = vmatprep.subr.mxu0 0.0
  %233 = vmatpush1.msra.mxu0 0.0
  %234 = vmatprep.subr.mxu0 0.0
  %235 = vmatpush1.msra.mxu0 0.0
  %236 = vmatprep.subr.mxu0 0.0
  %237 = vmatpush1.msra.mxu0 0.0
  %238 = vmatprep.subr.mxu0 0.0
  %239 = vmatpush1.msra.mxu0 0.0
  %240 = vmatprep.subr.mxu0 0.0
  %241 = vmatpush1.msra.mxu0 0.0
  %242 = vmatprep.subr.mxu0 0.0
  %243 = vmatpush1.msra.mxu0 0.0
  %244 = vmatprep.subr.mxu0 0.0
  %245 = vmatpush1.msra.mxu0 0.0
  %246 = vmatprep.subr.mxu0 0.0
  %247 = vmatpush1.msra.mxu0 0.0
  %248 = vmatprep.subr.mxu0 0.0
  %249 = vmatpush1.msra.mxu0 0.0
  %250 = vmatprep.subr.mxu0 0.0
  %251 = vmatpush1.msra.mxu0 0.0
  %252 = vmatprep.subr.mxu0 0.0
  %253 = vmatpush1.msra.mxu0 0.0
  %254 = vmatprep.subr.mxu0 0.0
  %255 = vmatpush1.msra.mxu0 0.0
  %256 = vmatprep.subr.mxu0 0.0
  %257 = vmatpush1.msra.mxu0 0.0
  %258 = vmatprep.subr.mxu0 0.0
  %259 = vmatpush1.msra.mxu0 0.0
  %260 = vmatprep.subr.mxu0 0.0
  %261 = vmatpush1.msra.mxu0 0.0
  %262 = vmatprep.subr.mxu0 0.0
  %263 = vmatpush1.msra.mxu0 0.0
  %264 = vmatprep.subr.mxu0 0.0
  %265 = vmatpush1.msra.mxu0 0.0
  %266 = vmatprep.subr.mxu0 0.0
  %267 = vmatpush1.msra.mxu0 0.0
  %268 = vmatprep.subr.mxu0 0.0
  %269 = vmatpush1.msra.mxu0 0.0
  %270 = vmatprep.subr.mxu0 0.0
  %271 = vmatpush1.msra.mxu0 0.0
  %272 = vmatprep.subr.mxu0 0.0
  %273 = vmatpush1.msra.mxu0 0.0
  %274 = vmatprep.subr.mxu0 0.0
  %275 = vmatpush1.msra.mxu0 0.0
  %276 = vmatprep.mubr.f32.mxu0 0.0
  %277 = vmatmul.mubr.f32.gmra.mrb[0].mxu0 %v210
  %v278 = vpop.f32.mrb[0].mxu0
  %v279 = vadd.f32 0.0, %v278
  %v280 = vpop.f32.mrb[0].mxu0
  %v281 = vadd.f32 0.0, %v280
  %282 = vdwg.mxu0
  %v283 = vadd.f32 %v146, %v279
  %v284 = vadd.f32 %v148, %v281
  %v285 = vxor.u32 %v283, 2147483648
  %v286 = vxor.u32 %v284, 2147483648
  %v287 = vmul.f32 %v285, 1.442695
  %v288 = vpow.pop %v287
  %v289 = vmul.f32 %v286, 1.442695
  %v290 = vpow.pop %v289
  %v291 = vadd.f32 %v288, 1.0
  %v292 = vadd.f32 %v290, 1.0
  %v293 = vrcp.pop %v291
  %v294 = vmul.f32 1.0, %v293
  %v295 = vrcp.pop %v292
  %v296 = vmul.f32 1.0, %v295
  %v297 = vtanh.pop %v284
  %v298 = vmul.f32 %v294, 0.0
  %v299 = vmul.f32 %v294, %v297
  %301 = vrot.lane.b32.xlu0 %v299, 64
  %v302 = vpop.permute.xlu0 %301
  %v304 = vadd.f32 %v298, %v302
  %v305 = vtanh.pop %v304
  %v306 = vmul.f32 %v296, %v305
  %308 = vrot.lane.b32.xlu0 %v306, 64
  %v309 = vpop.permute.xlu0 %308
  %v310 = vsel %vm208, %v309, 0
  %312 = vmatprep.subr.mxu0 %v193
  %313 = vmatpush1.msra.mxu0 %v192
  %314 = vmatprep.subr.mxu0 %v195
  %315 = vmatpush1.msra.mxu0 %v194
  %316 = vmatprep.subr.mxu0 %v197
  %317 = vmatpush1.msra.mxu0 %v196
  %318 = vmatprep.subr.mxu0 %v199
  %319 = vmatpush1.msra.mxu0 %v198
  %320 = vmatprep.subr.mxu0 %v201
  %321 = vmatpush1.msra.mxu0 %v200
  %322 = vmatprep.subr.mxu0 %v203
  %323 = vmatpush1.msra.mxu0 %v202
  %324 = vmatprep.subr.mxu0 %v205
  %325 = vmatpush1.msra.mxu0 %v204
  %326 = vmatprep.subr.mxu0 %v207
  %327 = vmatpush1.msra.mxu0 %v206
  %328 = vmatprep.subr.mxu0 0.0
  %329 = vmatpush1.msra.mxu0 0.0
  %330 = vmatprep.subr.mxu0 0.0
  %331 = vmatpush1.msra.mxu0 0.0
  %332 = vmatprep.subr.mxu0 0.0
  %333 = vmatpush1.msra.mxu0 0.0
  %334 = vmatprep.subr.mxu0 0.0
  %335 = vmatpush1.msra.mxu0 0.0
  %336 = vmatprep.subr.mxu0 0.0
  %337 = vmatpush1.msra.mxu0 0.0
  %338 = vmatprep.subr.mxu0 0.0
  %339 = vmatpush1.msra.mxu0 0.0
  %340 = vmatprep.subr.mxu0 0.0
  %341 = vmatpush1.msra.mxu0 0.0
  %342 = vmatprep.subr.mxu0 0.0
  %343 = vmatpush1.msra.mxu0 0.0
  %344 = vmatprep.subr.mxu0 0.0
  %345 = vmatpush1.msra.mxu0 0.0
  %346 = vmatprep.subr.mxu0 0.0
  %347 = vmatpush1.msra.mxu0 0.0
  %348 = vmatprep.subr.mxu0 0.0
  %349 = vmatpush1.msra.mxu0 0.0
  %350 = vmatprep.subr.mxu0 0.0
  %351 = vmatpush1.msra.mxu0 0.0
  %352 = vmatprep.subr.mxu0 0.0
  %353 = vmatpush1.msra.mxu0 0.0
  %354 = vmatprep.subr.mxu0 0.0
  %355 = vmatpush1.msra.mxu0 0.0
  %356 = vmatprep.subr.mxu0 0.0
  %357 = vmatpush1.msra.mxu0 0.0
  %358 = vmatprep.subr.mxu0 0.0
  %359 = vmatpush1.msra.mxu0 0.0
  %360 = vmatprep.subr.mxu0 0.0
  %361 = vmatpush1.msra.mxu0 0.0
  %362 = vmatprep.subr.mxu0 0.0
  %363 = vmatpush1.msra.mxu0 0.0
  %364 = vmatprep.subr.mxu0 0.0
  %365 = vmatpush1.msra.mxu0 0.0
  %366 = vmatprep.subr.mxu0 0.0
  %367 = vmatpush1.msra.mxu0 0.0
  %368 = vmatprep.subr.mxu0 0.0
  %369 = vmatpush1.msra.mxu0 0.0
  %370 = vmatprep.subr.mxu0 0.0
  %371 = vmatpush1.msra.mxu0 0.0
  %372 = vmatprep.subr.mxu0 0.0
  %373 = vmatpush1.msra.mxu0 0.0
  %374 = vmatprep.subr.mxu0 0.0
  %375 = vmatpush1.msra.mxu0 0.0
  %376 = vmatprep.mubr.f32.mxu0 0.0
  %377 = vmatmul.mubr.f32.gmra.mrb[0].mxu0 %v310
  %v378 = vpop.f32.mrb[0].mxu0
  %v379 = vadd.f32 0.0, %v378
  %v380 = vpop.f32.mrb[0].mxu0
  %v381 = vadd.f32 0.0, %v380
  %382 = vdwg.mxu0
  %v383 = vadd.f32 %v152, %v379
  %v384 = vadd.f32 %v154, %v381
  %v385 = vxor.u32 %v383, 2147483648
  %v386 = vxor.u32 %v384, 2147483648
  %v387 = vmul.f32 %v385, 1.442695
  %v388 = vpow.pop %v387
  %v389 = vmul.f32 %v386, 1.442695
  %v390 = vpow.pop %v389
  %v391 = vadd.f32 %v388, 1.0
  %v392 = vadd.f32 %v390, 1.0
  %v393 = vrcp.pop %v391
  %v394 = vmul.f32 1.0, %v393
  %v395 = vrcp.pop %v392
  %v396 = vmul.f32 1.0, %v395
  %v397 = vtanh.pop %v384
  %v398 = vmul.f32 %v394, %v304
  %v399 = vmul.f32 %v394, %v397
  %401 = vrot.lane.b32.xlu0 %v399, 64
  %v402 = vpop.permute.xlu0 %401
  %v404 = vadd.f32 %v398, %v402
  %v405 = vtanh.pop %v404
  %v406 = vmul.f32 %v396, %v405
  %408 = vrot.lane.b32.xlu0 %v406, 64
  %v409 = vpop.permute.xlu0 %408
  %v410 = vsel %vm208, %v409, 0
  %412 = vmatprep.subr.mxu0 %v193
  %413 = vmatpush1.msra.mxu0 %v192
  %414 = vmatprep.subr.mxu0 %v195
  %415 = vmatpush1.msra.mxu0 %v194
  %416 = vmatprep.subr.mxu0 %v197
  %417 = vmatpush1.msra.mxu0 %v196
  %418 = vmatprep.subr.mxu0 %v199
  %419 = vmatpush1.msra.mxu0 %v198
  %420 = vmatprep.subr.mxu0 %v201
  %421 = vmatpush1.msra.mxu0 %v200
  %422 = vmatprep.subr.mxu0 %v203
  %423 = vmatpush1.msra.mxu0 %v202
  %424 = vmatprep.subr.mxu0 %v205
  %425 = vmatpush1.msra.mxu0 %v204
  %426 = vmatprep.subr.mxu0 %v207
  %427 = vmatpush1.msra.mxu0 %v206
  %428 = vmatprep.subr.mxu0 0.0
  %429 = vmatpush1.msra.mxu0 0.0
  %430 = vmatprep.subr.mxu0 0.0
  %431 = vmatpush1.msra.mxu0 0.0
  %432 = vmatprep.subr.mxu0 0.0
  %433 = vmatpush1.msra.mxu0 0.0
  %434 = vmatprep.subr.mxu0 0.0
  %435 = vmatpush1.msra.mxu0 0.0
  %436 = vmatprep.subr.mxu0 0.0
  %437 = vmatpush1.msra.mxu0 0.0
  %438 = vmatprep.subr.mxu0 0.0
  %439 = vmatpush1.msra.mxu0 0.0
  %440 = vmatprep.subr.mxu0 0.0
  %441 = vmatpush1.msra.mxu0 0.0
  %442 = vmatprep.subr.mxu0 0.0
  %443 = vmatpush1.msra.mxu0 0.0
  %444 = vmatprep.subr.mxu0 0.0
  %445 = vmatpush1.msra.mxu0 0.0
  %446 = vmatprep.subr.mxu0 0.0
  %447 = vmatpush1.msra.mxu0 0.0
  %448 = vmatprep.subr.mxu0 0.0
  %449 = vmatpush1.msra.mxu0 0.0
  %450 = vmatprep.subr.mxu0 0.0
  %451 = vmatpush1.msra.mxu0 0.0
  %452 = vmatprep.subr.mxu0 0.0
  %453 = vmatpush1.msra.mxu0 0.0
  %454 = vmatprep.subr.mxu0 0.0
  %455 = vmatpush1.msra.mxu0 0.0
  %456 = vmatprep.subr.mxu0 0.0
  %457 = vmatpush1.msra.mxu0 0.0
  %458 = vmatprep.subr.mxu0 0.0
  %459 = vmatpush1.msra.mxu0 0.0
  %460 = vmatprep.subr.mxu0 0.0
  %461 = vmatpush1.msra.mxu0 0.0
  %462 = vmatprep.subr.mxu0 0.0
  %463 = vmatpush1.msra.mxu0 0.0
  %464 = vmatprep.subr.mxu0 0.0
  %465 = vmatpush1.msra.mxu0 0.0
  %466 = vmatprep.subr.mxu0 0.0
  %467 = vmatpush1.msra.mxu0 0.0
  %468 = vmatprep.subr.mxu0 0.0
  %469 = vmatpush1.msra.mxu0 0.0
  %470 = vmatprep.subr.mxu0 0.0
  %471 = vmatpush1.msra.mxu0 0.0
  %472 = vmatprep.subr.mxu0 0.0
  %473 = vmatpush1.msra.mxu0 0.0
  %474 = vmatprep.subr.mxu0 0.0
  %475 = vmatpush1.msra.mxu0 0.0
  %476 = vmatprep.mubr.f32.mxu0 0.0
  %477 = vmatmul.mubr.f32.gmra.mrb[0].mxu0 %v410
  %v478 = vpop.f32.mrb[0].mxu0
  %v479 = vadd.f32 0.0, %v478
  %v480 = vpop.f32.mrb[0].mxu0
  %v481 = vadd.f32 0.0, %v480
  %482 = vdwg.mxu0
  %v483 = vadd.f32 %v158, %v479
  %v484 = vadd.f32 %v160, %v481
  %v485 = vxor.u32 %v483, 2147483648
  %v486 = vxor.u32 %v484, 2147483648
  %v487 = vmul.f32 %v485, 1.442695
  %v488 = vpow.pop %v487
  %v489 = vmul.f32 %v486, 1.442695
  %v490 = vpow.pop %v489
  %v491 = vadd.f32 %v488, 1.0
  %v492 = vadd.f32 %v490, 1.0
  %v493 = vrcp.pop %v491
  %v494 = vmul.f32 1.0, %v493
  %v495 = vrcp.pop %v492
  %v496 = vmul.f32 1.0, %v495
  %v497 = vtanh.pop %v484
  %v498 = vmul.f32 %v494, %v404
  %v499 = vmul.f32 %v494, %v497
  %501 = vrot.lane.b32.xlu0 %v499, 64
  %v502 = vpop.permute.xlu0 %501
  %v504 = vadd.f32 %v498, %v502
  %v505 = vtanh.pop %v504
  %v506 = vmul.f32 %v496, %v505
  %508 = vrot.lane.b32.xlu0 %v506, 64
  %v509 = vpop.permute.xlu0 %508
  %v510 = vsel %vm208, %v509, 0
  %512 = vmatprep.subr.mxu0 %v193
  %513 = vmatpush1.msra.mxu0 %v192
  %514 = vmatprep.subr.mxu0 %v195
  %515 = vmatpush1.msra.mxu0 %v194
  %516 = vmatprep.subr.mxu0 %v197
  %517 = vmatpush1.msra.mxu0 %v196
  %518 = vmatprep.subr.mxu0 %v199
  %519 = vmatpush1.msra.mxu0 %v198
  %520 = vmatprep.subr.mxu0 %v201
  %521 = vmatpush1.msra.mxu0 %v200
  %522 = vmatprep.subr.mxu0 %v203
  %523 = vmatpush1.msra.mxu0 %v202
  %524 = vmatprep.subr.mxu0 %v205
  %525 = vmatpush1.msra.mxu0 %v204
  %526 = vmatprep.subr.mxu0 %v207
  %527 = vmatpush1.msra.mxu0 %v206
  %528 = vmatprep.subr.mxu0 0.0
  %529 = vmatpush1.msra.mxu0 0.0
  %530 = vmatprep.subr.mxu0 0.0
  %531 = vmatpush1.msra.mxu0 0.0
  %532 = vmatprep.subr.mxu0 0.0
  %533 = vmatpush1.msra.mxu0 0.0
  %534 = vmatprep.subr.mxu0 0.0
  %535 = vmatpush1.msra.mxu0 0.0
  %536 = vmatprep.subr.mxu0 0.0
  %537 = vmatpush1.msra.mxu0 0.0
  %538 = vmatprep.subr.mxu0 0.0
  %539 = vmatpush1.msra.mxu0 0.0
  %540 = vmatprep.subr.mxu0 0.0
  %541 = vmatpush1.msra.mxu0 0.0
  %542 = vmatprep.subr.mxu0 0.0
  %543 = vmatpush1.msra.mxu0 0.0
  %544 = vmatprep.subr.mxu0 0.0
  %545 = vmatpush1.msra.mxu0 0.0
  %546 = vmatprep.subr.mxu0 0.0
  %547 = vmatpush1.msra.mxu0 0.0
  %548 = vmatprep.subr.mxu0 0.0
  %549 = vmatpush1.msra.mxu0 0.0
  %550 = vmatprep.subr.mxu0 0.0
  %551 = vmatpush1.msra.mxu0 0.0
  %552 = vmatprep.subr.mxu0 0.0
  %553 = vmatpush1.msra.mxu0 0.0
  %554 = vmatprep.subr.mxu0 0.0
  %555 = vmatpush1.msra.mxu0 0.0
  %556 = vmatprep.subr.mxu0 0.0
  %557 = vmatpush1.msra.mxu0 0.0
  %558 = vmatprep.subr.mxu0 0.0
  %559 = vmatpush1.msra.mxu0 0.0
  %560 = vmatprep.subr.mxu0 0.0
  %561 = vmatpush1.msra.mxu0 0.0
  %562 = vmatprep.subr.mxu0 0.0
  %563 = vmatpush1.msra.mxu0 0.0
  %564 = vmatprep.subr.mxu0 0.0
  %565 = vmatpush1.msra.mxu0 0.0
  %566 = vmatprep.subr.mxu0 0.0
  %567 = vmatpush1.msra.mxu0 0.0
  %568 = vmatprep.subr.mxu0 0.0
  %569 = vmatpush1.msra.mxu0 0.0
  %570 = vmatprep.subr.mxu0 0.0
  %571 = vmatpush1.msra.mxu0 0.0
  %572 = vmatprep.subr.mxu0 0.0
  %573 = vmatpush1.msra.mxu0 0.0
  %574 = vmatprep.subr.mxu0 0.0
  %575 = vmatpush1.msra.mxu0 0.0
  %576 = vmatprep.mubr.f32.mxu0 0.0
  %577 = vmatmul.mubr.f32.gmra.mrb[0].mxu0 %v510
  %v578 = vpop.f32.mrb[0].mxu0
  %v579 = vadd.f32 0.0, %v578
  %v580 = vpop.f32.mrb[0].mxu0
  %v581 = vadd.f32 0.0, %v580
  %582 = vdwg.mxu0
  %v583 = vadd.f32 %v164, %v579
  %v584 = vadd.f32 %v166, %v581
  %v585 = vxor.u32 %v583, 2147483648
  %v586 = vxor.u32 %v584, 2147483648
  %v587 = vmul.f32 %v585, 1.442695
  %v588 = vpow.pop %v587
  %v589 = vmul.f32 %v586, 1.442695
  %v590 = vpow.pop %v589
  %v591 = vadd.f32 %v588, 1.0
  %v592 = vadd.f32 %v590, 1.0
  %v593 = vrcp.pop %v591
  %v594 = vmul.f32 1.0, %v593
  %v595 = vrcp.pop %v592
  %v596 = vmul.f32 1.0, %v595
  %v597 = vtanh.pop %v584
  %v598 = vmul.f32 %v594, %v504
  %v599 = vmul.f32 %v594, %v597
  %601 = vrot.lane.b32.xlu0 %v599, 64
  %v602 = vpop.permute.xlu0 %601
  %v604 = vadd.f32 %v598, %v602
  %v605 = vtanh.pop %v604
  %v606 = vmul.f32 %v596, %v605
  %608 = vrot.lane.b32.xlu0 %v606, 64
  %v609 = vpop.permute.xlu0 %608
  %v610 = vsel %vm208, %v609, 0
  %612 = vmatprep.subr.mxu0 %v193
  %613 = vmatpush1.msra.mxu0 %v192
  %614 = vmatprep.subr.mxu0 %v195
  %615 = vmatpush1.msra.mxu0 %v194
  %616 = vmatprep.subr.mxu0 %v197
  %617 = vmatpush1.msra.mxu0 %v196
  %618 = vmatprep.subr.mxu0 %v199
  %619 = vmatpush1.msra.mxu0 %v198
  %620 = vmatprep.subr.mxu0 %v201
  %621 = vmatpush1.msra.mxu0 %v200
  %622 = vmatprep.subr.mxu0 %v203
  %623 = vmatpush1.msra.mxu0 %v202
  %624 = vmatprep.subr.mxu0 %v205
  %625 = vmatpush1.msra.mxu0 %v204
  %626 = vmatprep.subr.mxu0 %v207
  %627 = vmatpush1.msra.mxu0 %v206
  %628 = vmatprep.subr.mxu0 0.0
  %629 = vmatpush1.msra.mxu0 0.0
  %630 = vmatprep.subr.mxu0 0.0
  %631 = vmatpush1.msra.mxu0 0.0
  %632 = vmatprep.subr.mxu0 0.0
  %633 = vmatpush1.msra.mxu0 0.0
  %634 = vmatprep.subr.mxu0 0.0
  %635 = vmatpush1.msra.mxu0 0.0
  %636 = vmatprep.subr.mxu0 0.0
  %637 = vmatpush1.msra.mxu0 0.0
  %638 = vmatprep.subr.mxu0 0.0
  %639 = vmatpush1.msra.mxu0 0.0
  %640 = vmatprep.subr.mxu0 0.0
  %641 = vmatpush1.msra.mxu0 0.0
  %642 = vmatprep.subr.mxu0 0.0
  %643 = vmatpush1.msra.mxu0 0.0
  %644 = vmatprep.subr.mxu0 0.0
  %645 = vmatpush1.msra.mxu0 0.0
  %646 = vmatprep.subr.mxu0 0.0
  %647 = vmatpush1.msra.mxu0 0.0
  %648 = vmatprep.subr.mxu0 0.0
  %649 = vmatpush1.msra.mxu0 0.0
  %650 = vmatprep.subr.mxu0 0.0
  %651 = vmatpush1.msra.mxu0 0.0
  %652 = vmatprep.subr.mxu0 0.0
  %653 = vmatpush1.msra.mxu0 0.0
  %654 = vmatprep.subr.mxu0 0.0
  %655 = vmatpush1.msra.mxu0 0.0
  %656 = vmatprep.subr.mxu0 0.0
  %657 = vmatpush1.msra.mxu0 0.0
  %658 = vmatprep.subr.mxu0 0.0
  %659 = vmatpush1.msra.mxu0 0.0
  %660 = vmatprep.subr.mxu0 0.0
  %661 = vmatpush1.msra.mxu0 0.0
  %662 = vmatprep.subr.mxu0 0.0
  %663 = vmatpush1.msra.mxu0 0.0
  %664 = vmatprep.subr.mxu0 0.0
  %665 = vmatpush1.msra.mxu0 0.0
  %666 = vmatprep.subr.mxu0 0.0
  %667 = vmatpush1.msra.mxu0 0.0
  %668 = vmatprep.subr.mxu0 0.0
  %669 = vmatpush1.msra.mxu0 0.0
  %670 = vmatprep.subr.mxu0 0.0
  %671 = vmatpush1.msra.mxu0 0.0
  %672 = vmatprep.subr.mxu0 0.0
  %673 = vmatpush1.msra.mxu0 0.0
  %674 = vmatprep.subr.mxu0 0.0
  %675 = vmatpush1.msra.mxu0 0.0
  %676 = vmatprep.mubr.f32.mxu0 0.0
  %677 = vmatmul.mubr.f32.gmra.mrb[0].mxu0 %v610
  %v678 = vpop.f32.mrb[0].mxu0
  %v679 = vadd.f32 0.0, %v678
  %v680 = vpop.f32.mrb[0].mxu0
  %v681 = vadd.f32 0.0, %v680
  %682 = vdwg.mxu0
  %v683 = vadd.f32 %v170, %v679
  %v684 = vadd.f32 %v172, %v681
  %v685 = vxor.u32 %v683, 2147483648
  %v686 = vxor.u32 %v684, 2147483648
  %v687 = vmul.f32 %v685, 1.442695
  %v688 = vpow.pop %v687
  %v689 = vmul.f32 %v686, 1.442695
  %v690 = vpow.pop %v689
  %v691 = vadd.f32 %v688, 1.0
  %v692 = vadd.f32 %v690, 1.0
  %v693 = vrcp.pop %v691
  %v694 = vmul.f32 1.0, %v693
  %v695 = vrcp.pop %v692
  %v696 = vmul.f32 1.0, %v695
  %v697 = vtanh.pop %v684
  %v698 = vmul.f32 %v694, %v604
  %v699 = vmul.f32 %v694, %v697
  %701 = vrot.lane.b32.xlu0 %v699, 64
  %v702 = vpop.permute.xlu0 %701
  %v704 = vadd.f32 %v698, %v702
  %v705 = vtanh.pop %v704
  %v706 = vmul.f32 %v696, %v705
  %708 = vrot.lane.b32.xlu0 %v706, 64
  %v709 = vpop.permute.xlu0 %708
  %v710 = vsel %vm208, %v709, 0
  %712 = vmatprep.subr.mxu0 %v193
  %713 = vmatpush1.msra.mxu0 %v192
  %714 = vmatprep.subr.mxu0 %v195
  %715 = vmatpush1.msra.mxu0 %v194
  %716 = vmatprep.subr.mxu0 %v197
  %717 = vmatpush1.msra.mxu0 %v196
  %718 = vmatprep.subr.mxu0 %v199
  %719 = vmatpush1.msra.mxu0 %v198
  %720 = vmatprep.subr.mxu0 %v201
  %721 = vmatpush1.msra.mxu0 %v200
  %722 = vmatprep.subr.mxu0 %v203
  %723 = vmatpush1.msra.mxu0 %v202
  %724 = vmatprep.subr.mxu0 %v205
  %725 = vmatpush1.msra.mxu0 %v204
  %726 = vmatprep.subr.mxu0 %v207
  %727 = vmatpush1.msra.mxu0 %v206
  %728 = vmatprep.subr.mxu0 0.0
  %729 = vmatpush1.msra.mxu0 0.0
  %730 = vmatprep.subr.mxu0 0.0
  %731 = vmatpush1.msra.mxu0 0.0
  %732 = vmatprep.subr.mxu0 0.0
  %733 = vmatpush1.msra.mxu0 0.0
  %734 = vmatprep.subr.mxu0 0.0
  %735 = vmatpush1.msra.mxu0 0.0
  %736 = vmatprep.subr.mxu0 0.0
  %737 = vmatpush1.msra.mxu0 0.0
  %738 = vmatprep.subr.mxu0 0.0
  %739 = vmatpush1.msra.mxu0 0.0
  %740 = vmatprep.subr.mxu0 0.0
  %741 = vmatpush1.msra.mxu0 0.0
  %742 = vmatprep.subr.mxu0 0.0
  %743 = vmatpush1.msra.mxu0 0.0
  %744 = vmatprep.subr.mxu0 0.0
  %745 = vmatpush1.msra.mxu0 0.0
  %746 = vmatprep.subr.mxu0 0.0
  %747 = vmatpush1.msra.mxu0 0.0
  %748 = vmatprep.subr.mxu0 0.0
  %749 = vmatpush1.msra.mxu0 0.0
  %750 = vmatprep.subr.mxu0 0.0
  %751 = vmatpush1.msra.mxu0 0.0
  %752 = vmatprep.subr.mxu0 0.0
  %753 = vmatpush1.msra.mxu0 0.0
  %754 = vmatprep.subr.mxu0 0.0
  %755 = vmatpush1.msra.mxu0 0.0
  %756 = vmatprep.subr.mxu0 0.0
  %757 = vmatpush1.msra.mxu0 0.0
  %758 = vmatprep.subr.mxu0 0.0
  %759 = vmatpush1.msra.mxu0 0.0
  %760 = vmatprep.subr.mxu0 0.0
  %761 = vmatpush1.msra.mxu0 0.0
  %762 = vmatprep.subr.mxu0 0.0
  %763 = vmatpush1.msra.mxu0 0.0
  %764 = vmatprep.subr.mxu0 0.0
  %765 = vmatpush1.msra.mxu0 0.0
  %766 = vmatprep.subr.mxu0 0.0
  %767 = vmatpush1.msra.mxu0 0.0
  %768 = vmatprep.subr.mxu0 0.0
  %769 = vmatpush1.msra.mxu0 0.0
  %770 = vmatprep.subr.mxu0 0.0
  %771 = vmatpush1.msra.mxu0 0.0
  %772 = vmatprep.subr.mxu0 0.0
  %773 = vmatpush1.msra.mxu0 0.0
  %774 = vmatprep.subr.mxu0 0.0
  %775 = vmatpush1.msra.mxu0 0.0
  %776 = vmatprep.mubr.f32.mxu0 0.0
  %777 = vmatmul.mubr.f32.gmra.mrb[0].mxu0 %v710
  %v778 = vpop.f32.mrb[0].mxu0
  %v779 = vadd.f32 0.0, %v778
  %v780 = vpop.f32.mrb[0].mxu0
  %v781 = vadd.f32 0.0, %v780
  %782 = vdwg.mxu0
  %v783 = vadd.f32 %v176, %v779
  %v784 = vadd.f32 %v178, %v781
  %v785 = vxor.u32 %v783, 2147483648
  %v786 = vxor.u32 %v784, 2147483648
  %v787 = vmul.f32 %v785, 1.442695
  %v788 = vpow.pop %v787
  %v789 = vmul.f32 %v786, 1.442695
  %v790 = vpow.pop %v789
  %v791 = vadd.f32 %v788, 1.0
  %v792 = vadd.f32 %v790, 1.0
  %v793 = vrcp.pop %v791
  %v794 = vmul.f32 1.0, %v793
  %v795 = vrcp.pop %v792
  %v796 = vmul.f32 1.0, %v795
  %v797 = vtanh.pop %v784
  %v798 = vmul.f32 %v794, %v704
  %v799 = vmul.f32 %v794, %v797
  %801 = vrot.lane.b32.xlu0 %v799, 64
  %v802 = vpop.permute.xlu0 %801
  %v804 = vadd.f32 %v798, %v802
  %v805 = vtanh.pop %v804
  %v806 = vmul.f32 %v796, %v805
  %808 = vrot.lane.b32.xlu0 %v806, 64
  %v809 = vpop.permute.xlu0 %808
  %v810 = vsel %vm208, %v809, 0
  %812 = vmatprep.subr.mxu0 %v193
  %813 = vmatpush1.msra.mxu0 %v192
  %814 = vmatprep.subr.mxu0 %v195
  %815 = vmatpush1.msra.mxu0 %v194
  %816 = vmatprep.subr.mxu0 %v197
  %817 = vmatpush1.msra.mxu0 %v196
  %818 = vmatprep.subr.mxu0 %v199
  %819 = vmatpush1.msra.mxu0 %v198
  %820 = vmatprep.subr.mxu0 %v201
  %821 = vmatpush1.msra.mxu0 %v200
  %822 = vmatprep.subr.mxu0 %v203
  %823 = vmatpush1.msra.mxu0 %v202
  %824 = vmatprep.subr.mxu0 %v205
  %825 = vmatpush1.msra.mxu0 %v204
  %826 = vmatprep.subr.mxu0 %v207
  %827 = vmatpush1.msra.mxu0 %v206
  %828 = vmatprep.subr.mxu0 0.0
  %829 = vmatpush1.msra.mxu0 0.0
  %830 = vmatprep.subr.mxu0 0.0
  %831 = vmatpush1.msra.mxu0 0.0
  %832 = vmatprep.subr.mxu0 0.0
  %833 = vmatpush1.msra.mxu0 0.0
  %834 = vmatprep.subr.mxu0 0.0
  %835 = vmatpush1.msra.mxu0 0.0
  %836 = vmatprep.subr.mxu0 0.0
  %837 = vmatpush1.msra.mxu0 0.0
  %838 = vmatprep.subr.mxu0 0.0
  %839 = vmatpush1.msra.mxu0 0.0
  %840 = vmatprep.subr.mxu0 0.0
  %841 = vmatpush1.msra.mxu0 0.0
  %842 = vmatprep.subr.mxu0 0.0
  %843 = vmatpush1.msra.mxu0 0.0
  %844 = vmatprep.subr.mxu0 0.0
  %845 = vmatpush1.msra.mxu0 0.0
  %846 = vmatprep.subr.mxu0 0.0
  %847 = vmatpush1.msra.mxu0 0.0
  %848 = vmatprep.subr.mxu0 0.0
  %849 = vmatpush1.msra.mxu0 0.0
  %850 = vmatprep.subr.mxu0 0.0
  %851 = vmatpush1.msra.mxu0 0.0
  %852 = vmatprep.subr.mxu0 0.0
  %853 = vmatpush1.msra.mxu0 0.0
  %854 = vmatprep.subr.mxu0 0.0
  %855 = vmatpush1.msra.mxu0 0.0
  %856 = vmatprep.subr.mxu0 0.0
  %857 = vmatpush1.msra.mxu0 0.0
  %858 = vmatprep.subr.mxu0 0.0
  %859 = vmatpush1.msra.mxu0 0.0
  %860 = vmatprep.subr.mxu0 0.0
  %861 = vmatpush1.msra.mxu0 0.0
  %862 = vmatprep.subr.mxu0 0.0
  %863 = vmatpush1.msra.mxu0 0.0
  %864 = vmatprep.subr.mxu0 0.0
  %865 = vmatpush1.msra.mxu0 0.0
  %866 = vmatprep.subr.mxu0 0.0
  %867 = vmatpush1.msra.mxu0 0.0
  %868 = vmatprep.subr.mxu0 0.0
  %869 = vmatpush1.msra.mxu0 0.0
  %870 = vmatprep.subr.mxu0 0.0
  %871 = vmatpush1.msra.mxu0 0.0
  %872 = vmatprep.subr.mxu0 0.0
  %873 = vmatpush1.msra.mxu0 0.0
  %874 = vmatprep.subr.mxu0 0.0
  %875 = vmatpush1.msra.mxu0 0.0
  %876 = vmatprep.mubr.f32.mxu0 0.0
  %877 = vmatmul.mubr.f32.gmra.mrb[0].mxu0 %v810
  %v878 = vpop.f32.mrb[0].mxu0
  %v879 = vadd.f32 0.0, %v878
  %v880 = vpop.f32.mrb[0].mxu0
  %v881 = vadd.f32 0.0, %v880
  %882 = vdwg.mxu0
  %v883 = vadd.f32 %v182, %v879
  %v884 = vadd.f32 %v184, %v881
  %v885 = vxor.u32 %v883, 2147483648
  %v886 = vxor.u32 %v884, 2147483648
  %v887 = vmul.f32 %v885, 1.442695
  %v888 = vpow.pop %v887
  %v889 = vmul.f32 %v886, 1.442695
  %v890 = vpow.pop %v889
  %v891 = vadd.f32 %v888, 1.0
  %v892 = vadd.f32 %v890, 1.0
  %v893 = vrcp.pop %v891
  %v894 = vmul.f32 1.0, %v893
  %v895 = vrcp.pop %v892
  %v896 = vmul.f32 1.0, %v895
  %v897 = vtanh.pop %v884
  %v898 = vmul.f32 %v894, %v804
  %v899 = vmul.f32 %v894, %v897
  %901 = vrot.lane.b32.xlu0 %v899, 64
  %v902 = vpop.permute.xlu0 %901
  %v904 = vadd.f32 %v898, %v902
  %v905 = vtanh.pop %v904
  %v906 = vmul.f32 %v896, %v905
  %908 = vrot.lane.b32.xlu0 %v906, 64
  %v909 = vpop.permute.xlu0 %908
  %v910 = vsel %vm208, %v909, 0
  %912 = vmatprep.subr.mxu0 %v193
  %913 = vmatpush1.msra.mxu0 %v192
  %914 = vmatprep.subr.mxu0 %v195
  %915 = vmatpush1.msra.mxu0 %v194
  %916 = vmatprep.subr.mxu0 %v197
  %917 = vmatpush1.msra.mxu0 %v196
  %918 = vmatprep.subr.mxu0 %v199
  %919 = vmatpush1.msra.mxu0 %v198
  %920 = vmatprep.subr.mxu0 %v201
  %921 = vmatpush1.msra.mxu0 %v200
  %922 = vmatprep.subr.mxu0 %v203
  %923 = vmatpush1.msra.mxu0 %v202
  %924 = vmatprep.subr.mxu0 %v205
  %925 = vmatpush1.msra.mxu0 %v204
  %926 = vmatprep.subr.mxu0 %v207
  %927 = vmatpush1.msra.mxu0 %v206
  %928 = vmatprep.subr.mxu0 0.0
  %929 = vmatpush1.msra.mxu0 0.0
  %930 = vmatprep.subr.mxu0 0.0
  %931 = vmatpush1.msra.mxu0 0.0
  %932 = vmatprep.subr.mxu0 0.0
  %933 = vmatpush1.msra.mxu0 0.0
  %934 = vmatprep.subr.mxu0 0.0
  %935 = vmatpush1.msra.mxu0 0.0
  %936 = vmatprep.subr.mxu0 0.0
  %937 = vmatpush1.msra.mxu0 0.0
  %938 = vmatprep.subr.mxu0 0.0
  %939 = vmatpush1.msra.mxu0 0.0
  %940 = vmatprep.subr.mxu0 0.0
  %941 = vmatpush1.msra.mxu0 0.0
  %942 = vmatprep.subr.mxu0 0.0
  %943 = vmatpush1.msra.mxu0 0.0
  %944 = vmatprep.subr.mxu0 0.0
  %945 = vmatpush1.msra.mxu0 0.0
  %946 = vmatprep.subr.mxu0 0.0
  %947 = vmatpush1.msra.mxu0 0.0
  %948 = vmatprep.subr.mxu0 0.0
  %949 = vmatpush1.msra.mxu0 0.0
  %950 = vmatprep.subr.mxu0 0.0
  %951 = vmatpush1.msra.mxu0 0.0
  %952 = vmatprep.subr.mxu0 0.0
  %953 = vmatpush1.msra.mxu0 0.0
  %954 = vmatprep.subr.mxu0 0.0
  %955 = vmatpush1.msra.mxu0 0.0
  %956 = vmatprep.subr.mxu0 0.0
  %957 = vmatpush1.msra.mxu0 0.0
  %958 = vmatprep.subr.mxu0 0.0
  %959 = vmatpush1.msra.mxu0 0.0
  %960 = vmatprep.subr.mxu0 0.0
  %961 = vmatpush1.msra.mxu0 0.0
  %962 = vmatprep.subr.mxu0 0.0
  %963 = vmatpush1.msra.mxu0 0.0
  %964 = vmatprep.subr.mxu0 0.0
  %965 = vmatpush1.msra.mxu0 0.0
  %966 = vmatprep.subr.mxu0 0.0
  %967 = vmatpush1.msra.mxu0 0.0
  %968 = vmatprep.subr.mxu0 0.0
  %969 = vmatpush1.msra.mxu0 0.0
  %970 = vmatprep.subr.mxu0 0.0
  %971 = vmatpush1.msra.mxu0 0.0
  %972 = vmatprep.subr.mxu0 0.0
  %973 = vmatpush1.msra.mxu0 0.0
  %974 = vmatprep.subr.mxu0 0.0
  %975 = vmatpush1.msra.mxu0 0.0
  %976 = vmatprep.mubr.f32.mxu0 0.0
  %977 = vmatmul.mubr.f32.gmra.mrb[0].mxu0 %v910
  %v978 = vpop.f32.mrb[0].mxu0
  %v979 = vadd.f32 0.0, %v978
  %v980 = vpop.f32.mrb[0].mxu0
  %v981 = vadd.f32 0.0, %v980
  %982 = vdwg.mxu0
  %v983 = vadd.f32 %v188, %v979
  %v984 = vadd.f32 %v190, %v981
  %v985 = vxor.u32 %v983, 2147483648
  %v986 = vxor.u32 %v984, 2147483648
  %v987 = vmul.f32 %v985, 1.442695
  %v988 = vpow.pop %v987
  %v989 = vmul.f32 %v986, 1.442695
  %v990 = vpow.pop %v989
  %v991 = vadd.f32 %v988, 1.0
  %v992 = vadd.f32 %v990, 1.0
  %v993 = vrcp.pop %v991
  %v994 = vmul.f32 1.0, %v993
  %v995 = vrcp.pop %v992
  %v996 = vmul.f32 1.0, %v995
  %v997 = vtanh.pop %v984
  %v998 = vmul.f32 %v994, %v904
  %v999 = vmul.f32 %v994, %v997
  %1001 = vrot.lane.b32.xlu0 %v999, 64
  %v1002 = vpop.permute.xlu0 %1001
  %v1004 = vadd.f32 %v998, %v1002
  %v1005 = vtanh.pop %v1004
  %v1006 = vmul.f32 %v996, %v1005
  %v1007 = vld [vmem:[%s4] sm:$0xff]
  %v1008 = vld [vmem:[%s4 + $0x8] sm:$0xff]
  %v1009 = vld [vmem:[%s4 + $0x10] sm:$0xff]
  %v1010 = vld [vmem:[%s4 + $0x18] sm:$0xff]
  %v1011 = vld [vmem:[%s5] sm:$0xff]
  %v1012 = vld [vmem:[%s5 + $0x8] sm:$0xff]
  %v1013 = vld [vmem:[%s5 + $0x10] sm:$0xff]
  %v1014 = vld [vmem:[%s5 + $0x18] sm:$0xff]
  %1016 = vrot.lane.b32.xlu0 %v1006, 32
  %v1017 = vpop.permute.xlu0 %1016
  %1018 = vrot.lane.b32.xlu0 %v906, 32
  %v1019 = vpop.permute.xlu0 %1018
  %1020 = vrot.lane.b32.xlu0 %v806, 32
  %v1021 = vpop.permute.xlu0 %1020
  %1022 = vrot.lane.b32.xlu0 %v706, 32
  %v1023 = vpop.permute.xlu0 %1022
  %1024 = vrot.lane.b32.xlu0 %v606, 32
  %v1025 = vpop.permute.xlu0 %1024
  %1026 = vrot.lane.b32.xlu0 %v506, 32
  %v1027 = vpop.permute.xlu0 %1026
  %1028 = vrot.lane.b32.xlu0 %v406, 32
  %v1029 = vpop.permute.xlu0 %1028
  %1030 = vrot.lane.b32.xlu0 %v306, 32
  %v1031 = vpop.permute.xlu0 %1030
  %v1032 = vsel %vm54, %v1017, 0
  %v1034 = vsel %vm54, %v1019, 0
  %v1036 = vsel %vm54, %v1021, 0
  %v1038 = vsel %vm54, %v1023, 0
  %v1040 = vsel %vm54, %v1025, 0
  %v1042 = vsel %vm54, %v1027, 0
  %v1044 = vsel %vm54, %v1029, 0
  %v1046 = vsel %vm54, %v1031, 0
  %1048 = vmatprep.subr.mxu0 0.0
  %1049 = vmatpush1.msra.mxu0 %v1011
  %1050 = vmatprep.subr.mxu0 0.0
  %1051 = vmatpush1.msra.mxu0 %v1012
  %1052 = vmatprep.subr.mxu0 0.0
  %1053 = vmatpush1.msra.mxu0 %v1013
  %1054 = vmatprep.subr.mxu0 0.0
  %1055 = vmatpush1.msra.mxu0 %v1014
  %1056 = vmatprep.subr.mxu0 0.0
  %1057 = vmatpush1.msra.mxu0 0.0
  %1058 = vmatprep.subr.mxu0 0.0
  %1059 = vmatpush1.msra.mxu0 0.0
  %1060 = vmatprep.subr.mxu0 0.0
  %1061 = vmatpush1.msra.mxu0 0.0
  %1062 = vmatprep.subr.mxu0 0.0
  %1063 = vmatpush1.msra.mxu0 0.0
  %1064 = vmatprep.subr.mxu0 0.0
  %1065 = vmatpush1.msra.mxu0 0.0
  %1066 = vmatprep.subr.mxu0 0.0
  %1067 = vmatpush1.msra.mxu0 0.0
  %1068 = vmatprep.subr.mxu0 0.0
  %1069 = vmatpush1.msra.mxu0 0.0
  %1070 = vmatprep.subr.mxu0 0.0
  %1071 = vmatpush1.msra.mxu0 0.0
  %1072 = vmatprep.subr.mxu0 0.0
  %1073 = vmatpush1.msra.mxu0 0.0
  %1074 = vmatprep.subr.mxu0 0.0
  %1075 = vmatpush1.msra.mxu0 0.0
  %1076 = vmatprep.subr.mxu0 0.0
  %1077 = vmatpush1.msra.mxu0 0.0
  %1078 = vmatprep.subr.mxu0 0.0
  %1079 = vmatpush1.msra.mxu0 0.0
  %1080 = vmatprep.subr.mxu0 0.0
  %1081 = vmatpush1.msra.mxu0 0.0
  %1082 = vmatprep.subr.mxu0 0.0
  %1083 = vmatpush1.msra.mxu0 0.0
  %1084 = vmatprep.subr.mxu0 0.0
  %1085 = vmatpush1.msra.mxu0 0.0
  %1086 = vmatprep.subr.mxu0 0.0
  %1087 = vmatpush1.msra.mxu0 0.0
  %1088 = vmatprep.subr.mxu0 0.0
  %1089 = vmatpush1.msra.mxu0 0.0
  %1090 = vmatprep.subr.mxu0 0.0
  %1091 = vmatpush1.msra.mxu0 0.0
  %1092 = vmatprep.subr.mxu0 0.0
  %1093 = vmatpush1.msra.mxu0 0.0
  %1094 = vmatprep.subr.mxu0 0.0
  %1095 = vmatpush1.msra.mxu0 0.0
  %1096 = vmatprep.subr.mxu0 0.0
  %1097 = vmatpush1.msra.mxu0 0.0
  %1098 = vmatprep.subr.mxu0 0.0
  %1099 = vmatpush1.msra.mxu0 0.0
  %1100 = vmatprep.subr.mxu0 0.0
  %1101 = vmatpush1.msra.mxu0 0.0
  %1102 = vmatprep.subr.mxu0 0.0
  %1103 = vmatpush1.msra.mxu0 0.0
  %1104 = vmatprep.subr.mxu0 0.0
  %1105 = vmatpush1.msra.mxu0 0.0
  %1106 = vmatprep.subr.mxu0 0.0
  %1107 = vmatpush1.msra.mxu0 0.0
  %1108 = vmatprep.subr.mxu0 0.0
  %1109 = vmatpush1.msra.mxu0 0.0
  %1110 = vmatprep.subr.mxu0 0.0
  %1111 = vmatpush1.msra.mxu0 0.0
  %1112 = vmatprep.mubr.f32.mxu0 0.0
  %1113 = vmatmul.mubr.f32.gmra.mrb[0].mxu0 %v1032
  %v1114 = vpop.f32.mrb[0].mxu0
  %v1115 = vadd.f32 0.0, %v1114
  %v1116 = vpop.f32.mrb[0].mxu0
  %1117 = vmatprep.mubr.f32.mxu0 0.0
  %1118 = vmatmul.mubr.f32.gmra.mrb[0].mxu0 %v1034
  %v1119 = vpop.f32.mrb[0].mxu0
  %v1120 = vadd.f32 0.0, %v1119
  %v1121 = vpop.f32.mrb[0].mxu0
  %1122 = vmatprep.mubr.f32.mxu0 0.0
  %1123 = vmatmul.mubr.f32.gmra.mrb[0].mxu0 %v1036
  %v1124 = vpop.f32.mrb[0].mxu0
  %v1125 = vadd.f32 0.0, %v1124
  %v1126 = vpop.f32.mrb[0].mxu0
  %1127 = vmatprep.mubr.f32.mxu0 0.0
  %1128 = vmatmul.mubr.f32.gmra.mrb[0].mxu0 %v1038
  %v1129 = vpop.f32.mrb[0].mxu0
  %v1130 = vadd.f32 0.0, %v1129
  %v1131 = vpop.f32.mrb[0].mxu0
  %1132 = vmatprep.mubr.f32.mxu0 0.0
  %1133 = vmatmul.mubr.f32.gmra.mrb[0].mxu0 %v1040
  %v1134 = vpop.f32.mrb[0].mxu0
  %v1135 = vadd.f32 0.0, %v1134
  %v1136 = vpop.f32.mrb[0].mxu0
  %1137 = vmatprep.mubr.f32.mxu0 0.0
  %1138 = vmatmul.mubr.f32.gmra.mrb[0].mxu0 %v1042
  %v1139 = vpop.f32.mrb[0].mxu0
  %v1140 = vadd.f32 0.0, %v1139
  %v1141 = vpop.f32.mrb[0].mxu0
  %1142 = vmatprep.mubr.f32.mxu0 0.0
  %1143 = vmatmul.mubr.f32.gmra.mrb[0].mxu0 %v1044
  %v1144 = vpop.f32.mrb[0].mxu0
  %v1145 = vadd.f32 0.0, %v1144
  %v1146 = vpop.f32.mrb[0].mxu0
  %1147 = vmatprep.mubr.f32.mxu0 0.0
  %1148 = vmatmul.mubr.f32.gmra.mrb[0].mxu0 %v1046
  %v1149 = vpop.f32.mrb[0].mxu0
  %v1150 = vadd.f32 0.0, %v1149
  %v1151 = vpop.f32.mrb[0].mxu0
  %1152 = vdwg.mxu0
  %1153 = vrot.lane.b32.xlu0 %v1006, 64
  %v1154 = vpop.permute.xlu0 %1153
  %v1155 = vsel %vm54, %v309, 0
  %v1157 = vsel %vm54, %v409, 0
  %v1159 = vsel %vm54, %v509, 0
  %v1161 = vsel %vm54, %v609, 0
  %v1163 = vsel %vm54, %v709, 0
  %v1165 = vsel %vm54, %v809, 0
  %v1167 = vsel %vm54, %v909, 0
  %v1169 = vsel %vm54, %v1154, 0
  %1171 = vmatprep.subr.mxu0 0.0
  %1172 = vmatpush1.msra.mxu0 %v1007
  %1173 = vmatprep.subr.mxu0 0.0
  %1174 = vmatpush1.msra.mxu0 %v1008
  %1175 = vmatprep.subr.mxu0 0.0
  %1176 = vmatpush1.msra.mxu0 %v1009
  %1177 = vmatprep.subr.mxu0 0.0
  %1178 = vmatpush1.msra.mxu0 %v1010
  %1179 = vmatprep.subr.mxu0 0.0
  %1180 = vmatpush1.msra.mxu0 0.0
  %1181 = vmatprep.subr.mxu0 0.0
  %1182 = vmatpush1.msra.mxu0 0.0
  %1183 = vmatprep.subr.mxu0 0.0
  %1184 = vmatpush1.msra.mxu0 0.0
  %1185 = vmatprep.subr.mxu0 0.0
  %1186 = vmatpush1.msra.mxu0 0.0
  %1187 = vmatprep.subr.mxu0 0.0
  %1188 = vmatpush1.msra.mxu0 0.0
  %1189 = vmatprep.subr.mxu0 0.0
  %1190 = vmatpush1.msra.mxu0 0.0
  %1191 = vmatprep.subr.mxu0 0.0
  %1192 = vmatpush1.msra.mxu0 0.0
  %1193 = vmatprep.subr.mxu0 0.0
  %1194 = vmatpush1.msra.mxu0 0.0
  %1195 = vmatprep.subr.mxu0 0.0
  %1196 = vmatpush1.msra.mxu0 0.0
  %1197 = vmatprep.subr.mxu0 0.0
  %1198 = vmatpush1.msra.mxu0 0.0
  %1199 = vmatprep.subr.mxu0 0.0
  %1200 = vmatpush1.msra.mxu0 0.0
  %1201 = vmatprep.subr.mxu0 0.0
  %1202 = vmatpush1.msra.mxu0 0.0
  %1203 = vmatprep.subr.mxu0 0.0
  %1204 = vmatpush1.msra.mxu0 0.0
  %1205 = vmatprep.subr.mxu0 0.0
  %1206 = vmatpush1.msra.mxu0 0.0
  %1207 = vmatprep.subr.mxu0 0.0
  %1208 = vmatpush1.msra.mxu0 0.0
  %1209 = vmatprep.subr.mxu0 0.0
  %1210 = vmatpush1.msra.mxu0 0.0
  %1211 = vmatprep.subr.mxu0 0.0
  %1212 = vmatpush1.msra.mxu0 0.0
  %1213 = vmatprep.subr.mxu0 0.0
  %1214 = vmatpush1.msra.mxu0 0.0
  %1215 = vmatprep.subr.mxu0 0.0
  %1216 = vmatpush1.msra.mxu0 0.0
  %1217 = vmatprep.subr.mxu0 0.0
  %1218 = vmatpush1.msra.mxu0 0.0
  %1219 = vmatprep.subr.mxu0 0.0
  %1220 = vmatpush1.msra.mxu0 0.0
  %1221 = vmatprep.subr.mxu0 0.0
  %1222 = vmatpush1.msra.mxu0 0.0
  %1223 = vmatprep.subr.mxu0 0.0
  %1224 = vmatpush1.msra.mxu0 0.0
  %1225 = vmatprep.subr.mxu0 0.0
  %1226 = vmatpush1.msra.mxu0 0.0
  %1227 = vmatprep.subr.mxu0 0.0
  %1228 = vmatpush1.msra.mxu0 0.0
  %1229 = vmatprep.subr.mxu0 0.0
  %1230 = vmatpush1.msra.mxu0 0.0
  %1231 = vmatprep.subr.mxu0 0.0
  %1232 = vmatpush1.msra.mxu0 0.0
  %1233 = vmatprep.subr.mxu0 0.0
  %1234 = vmatpush1.msra.mxu0 0.0
  %1235 = vmatprep.mubr.f32.mxu0 0.0
  %1236 = vmatmul.mubr.f32.gmra.mrb[0].mxu0 %v1155
  %v1237 = vpop.f32.mrb[0].mxu0
  %v1238 = vadd.f32 %v1115, %v1237
  %v1239 = vpop.f32.mrb[0].mxu0
  %1240 = vmatprep.mubr.f32.mxu0 0.0
  %1241 = vmatmul.mubr.f32.gmra.mrb[0].mxu0 %v1157
  %v1242 = vpop.f32.mrb[0].mxu0
  %v1243 = vadd.f32 %v1120, %v1242
  %v1244 = vpop.f32.mrb[0].mxu0
  %1245 = vmatprep.mubr.f32.mxu0 0.0
  %1246 = vmatmul.mubr.f32.gmra.mrb[0].mxu0 %v1159
  %v1247 = vpop.f32.mrb[0].mxu0
  %v1248 = vadd.f32 %v1125, %v1247
  %v1249 = vpop.f32.mrb[0].mxu0
  %1250 = vmatprep.mubr.f32.mxu0 0.0
  %1251 = vmatmul.mubr.f32.gmra.mrb[0].mxu0 %v1161
  %v1252 = vpop.f32.mrb[0].mxu0
  %v1253 = vadd.f32 %v1130, %v1252
  %v1254 = vpop.f32.mrb[0].mxu0
  %1255 = vmatprep.mubr.f32.mxu0 0.0
  %1256 = vmatmul.mubr.f32.gmra.mrb[0].mxu0 %v1163
  %v1257 = vpop.f32.mrb[0].mxu0
  %v1258 = vadd.f32 %v1135, %v1257
  %v1259 = vpop.f32.mrb[0].mxu0
  %1260 = vmatprep.mubr.f32.mxu0 0.0
  %1261 = vmatmul.mubr.f32.gmra.mrb[0].mxu0 %v1165
  %v1262 = vpop.f32.mrb[0].mxu0
  %v1263 = vadd.f32 %v1140, %v1262
  %v1264 = vpop.f32.mrb[0].mxu0
  %1265 = vmatprep.mubr.f32.mxu0 0.0
  %1266 = vmatmul.mubr.f32.gmra.mrb[0].mxu0 %v1167
  %v1267 = vpop.f32.mrb[0].mxu0
  %v1268 = vadd.f32 %v1145, %v1267
  %v1269 = vpop.f32.mrb[0].mxu0
  %1270 = vmatprep.mubr.f32.mxu0 0.0
  %1271 = vmatmul.mubr.f32.gmra.mrb[0].mxu0 %v1169
  %v1272 = vpop.f32.mrb[0].mxu0
  %v1273 = vadd.f32 %v1150, %v1272
  %v1274 = vpop.f32.mrb[0].mxu0
  %1275 = vdwg.mxu0
  %v1276 = vld [vmem:[%s6] sm:$0x1]
  %v1278 = vlaneseq
  %v1279 = vshrl.u32 %v1278, 7
  %v1280 = vsub.s32 0, %v1279
  %v1281 = vrot.slane %v1276, %v1280
  %v1283 = vadd.f32 %v1238, %v1281
  %v1284 = vadd.f32 %v1243, %v1281
  %v1285 = vadd.f32 %v1248, %v1281
  %v1286 = vadd.f32 %v1253, %v1281
  %v1287 = vadd.f32 %v1258, %v1281
  %v1288 = vadd.f32 %v1263, %v1281
  %v1289 = vadd.f32 %v1268, %v1281
  %v1290 = vadd.f32 %v1273, %v1281
  %vm1291 = vcmask 130048
  %1292 = vst.msk [vmem:[%s7] sm:$0xff] %vm1291, %v1283
  %1293 = vst.msk [vmem:[%s7 + $0x8] sm:$0xff] %vm1291, %v1284
  %1294 = vst.msk [vmem:[%s7 + $0x10] sm:$0xff] %vm1291, %v1285
  %1295 = vst.msk [vmem:[%s7 + $0x18] sm:$0xff] %vm1291, %v1286
  %1296 = vst.msk [vmem:[%s7 + $0x20] sm:$0xff] %vm1291, %v1287
  %1297 = vst.msk [vmem:[%s7 + $0x28] sm:$0xff] %vm1291, %v1288
  %1298 = vst.msk [vmem:[%s7 + $0x30] sm:$0xff] %vm1291, %v1289
  %1299 = vst.msk [vmem:[%s7 + $0x38] sm:$0xff] %vm1291, %v1290
  // Predicated region
  $region30: #{tpu_custom_call.1} parent=0 // pred_check
    _
  $region31: #{tpu_custom_call.1} parent=0 // pred_check_branch
    %1301 = sbr.rel (0) target = $region33
  $region32: #{tpu_custom_call.1} parent=0 // pred_region
    _
  $region33: #{tpu_custom_call.1} parent=0 // pred_fallthru
    _
  // Predicated region
  $region34: #{tpu_custom_call.1} parent=0 // pred_check
    _
  $region35: #{tpu_custom_call.1} parent=0 // pred_check_branch
    %1303 = sbr.rel (0) target = $region37
  $region36: #{tpu_custom_call.1} parent=0 // pred_region
    _
  $region37: #{tpu_custom_call.1} parent=0 // pred_fallthru
    _

</llo_original>
